<compile_context>
chip_gen: v7x
topology: tpu7x:2x2x1
jax: 0.10.0
libtpu: 0.0.40
codegen_flags: <defaults>
</compile_context>

<pallas_src>
import numpy as np
import jax
import jax.numpy as jnp
from jax.experimental import pallas as pl
from jax.experimental.pallas import tpu as pltpu

HEAD_DIM = 64      # nn.MultiheadAttention(E, E // 64) -> head_dim = 64
LN_EPS = 1e-5
MLP_CHUNK = 1024   # lanes of the 4E hidden dimension processed per chunk


def _gated_sf_block_kernel(x_ref, wqkv_ref, bqkv_ref, wo_ref, bo_ref,
                           wfc_ref, bfc_ref, wpr_ref, bpr_ref,
                           out_ref, o_buf):
    L, E = x_ref.shape
    H = E // HEAD_DIM
    F = wfc_ref.shape[1]                           # 4E

    x = x_ref[...].astype(jnp.float32)             # (L, E): one batch element

    def normalize(v):                              # gain/bias folded into weights
        mu = jnp.mean(v, axis=-1, keepdims=True)
        var = jnp.mean(v * v, axis=-1, keepdims=True) - mu * mu   # single pass
        return (v - mu) * jax.lax.rsqrt(var + LN_EPS)

    # --- pre-LN 1 + fused Q/K/V projection (bf16 operands, f32 accumulate) ---
    n1 = normalize(x).astype(jnp.bfloat16)
    qkv = jnp.dot(n1, wqkv_ref[...],
                  preferred_element_type=jnp.float32) + bqkv_ref[...]   # (L, 3E) f32
    qkv = qkv.astype(jnp.bfloat16)                 # only used as matmul operands

    # --- multi-head attention (1/sqrt(d) folded into Q weights) --------------
    # Each head writes its (L, 64) output into o_buf, then one fused (L,E)@(E,E)
    # out-projection uses the full MXU depth. Each iteration terminates in a
    # ref store, keeping the per-head (L, L) temporaries short-lived.
    for h in range(H):                             # static unroll over heads
        lo = h * HEAD_DIM
        q_h = qkv[:, lo:lo + HEAD_DIM]                         # (L, D)
        k_h = qkv[:, E + lo:E + lo + HEAD_DIM]                 # (L, D)
        v_h = qkv[:, 2 * E + lo:2 * E + lo + HEAD_DIM]         # (L, D)
        s = jax.lax.dot_general(q_h, k_h, (((1,), (1,)), ((), ())),
                                preferred_element_type=jnp.float32)     # (L, L)
        s = s - jnp.max(s, axis=-1, keepdims=True)
        p = jnp.exp(s)
        denom = jnp.sum(p, axis=-1, keepdims=True)
        o_h = jnp.dot(p.astype(jnp.bfloat16), v_h,
                      preferred_element_type=jnp.float32)
        o_h = o_h * pl.reciprocal(denom, approx=True)          # deferred softmax norm
        o_buf[:, lo:lo + HEAD_DIM] = o_h.astype(jnp.bfloat16)

    attn = jnp.dot(o_buf[...], wo_ref[...],
                   preferred_element_type=jnp.float32)          # (L, E), K = E
    x1 = x + attn + bo_ref[...]                    # residual 1 (f32)

    # --- pre-LN 2 + MLP with QuickGELU, hidden dim chunked -------------------
    n2 = normalize(x1).astype(jnp.bfloat16)
    mlp = jnp.zeros((L, E), jnp.float32)
    for c0 in range(0, F, MLP_CHUNK):              # static chunk loop
        c1 = min(c0 + MLP_CHUNK, F)
        h1 = jnp.dot(n2, wfc_ref[:, c0:c1],
                     preferred_element_type=jnp.float32) + bfc_ref[:, c0:c1]
        g = h1 * jax.nn.sigmoid(1.702 * h1)        # QuickGELU (f32, EUP)
        mlp = mlp + jnp.dot(g.astype(jnp.bfloat16), wpr_ref[c0:c1, :],
                            preferred_element_type=jnp.float32)

    out_ref[...] = (x1 + mlp + bpr_ref[...]).astype(out_ref.dtype)   # residual 2


def _fold_params(params, E):
    """Fold LN gains/biases and the softmax scale into projection weights.

    Matmul weights are returned in bf16 (MXU operand dtype); biases stay f32.
    """
    f32, bf16 = jnp.float32, jnp.bfloat16
    g1, b1 = params["ln1_w"].astype(f32), params["ln1_b"].astype(f32)
    g2, b2 = params["ln2_w"].astype(f32), params["ln2_b"].astype(f32)

    wqkv_t = params["in_proj_w"].astype(f32).T                   # (E, 3E)
    wqkv_f = g1[:, None] * wqkv_t                                # LN1 gain
    bqkv_f = b1 @ wqkv_t + params["in_proj_b"].astype(f32)       # LN1 bias
    scale = jnp.concatenate([jnp.full((E,), 1.0 / np.sqrt(HEAD_DIM), f32),
                             jnp.ones((2 * E,), f32)])           # 1/sqrt(d) on Q only
    wqkv_f = wqkv_f * scale
    bqkv_f = bqkv_f * scale

    wo_t = params["out_proj_w"].astype(f32).T                    # (E, E)
    bo = params["out_proj_b"].astype(f32)

    wfc_t = params["fc_w"].astype(f32).T                         # (E, 4E)
    wfc_f = g2[:, None] * wfc_t                                  # LN2 gain
    bfc_f = b2 @ wfc_t + params["fc_b"].astype(f32)              # LN2 bias

    wpr_t = params["proj_w"].astype(f32).T                       # (4E, E)
    bpr = params["proj_b"].astype(f32)

    return [wqkv_f.astype(bf16), bqkv_f.reshape(1, -1),
            wo_t.astype(bf16),   bo.reshape(1, -1),
            wfc_f.astype(bf16),  bfc_f.reshape(1, -1),
            wpr_t.astype(bf16),  bpr.reshape(1, -1)]


def _vmem_capacity_bytes():
    try:
        cap = int(getattr(pltpu.get_tpu_info(), "vmem_capacity_bytes", 0))
        if cap > 0:
            return cap
    except Exception:
        pass
    return 64 * 2 ** 20     # conservative fallback: v7x per-TensorCore VMEM


def _resident_spec(shape):
    """BlockSpec for a weight that is resident across the whole grid."""
    index_map = lambda n: (0,) * len(shape)
    if hasattr(pl, "Buffered"):
        try:   # constant index_map -> single buffering is sufficient
            return pl.BlockSpec(shape, index_map, pipeline_mode=pl.Buffered(1))
        except Exception:
            pass
    return pl.BlockSpec(shape, index_map)


def gated_sf_attention_block(feature, params):
    """feature: (L, N, E), seq-first like PyTorch. Returns (L, N, E)."""
    L, N, E = feature.shape
    assert E % 128 == 0 and E % HEAD_DIM == 0, "E must be a multiple of 128"

    weights = _fold_params(params, E)

    # View (L, N, E) as (L, N*E): the (L, E) block at column-block n is exactly
    # feature[:, n, :]. Keeps native HBM layout and lane-dense 128-multiple DMA.
    x2d = feature.reshape(L, N * E)

    # Generation-aware VMEM budget.
    blk = L * E * 4
    w_bytes = sum(int(w.size) * w.dtype.itemsize for w in weights)
    inter = L * (3 * E * 4 + 3 * E * 2 + E * 2            # qkv f32 + bf16, o_buf
                 + 2 * min(4 * E, MLP_CHUNK) * 4          # h1 / g chunk
                 + 4 * E * 4)                             # n1/n2/x1/mlp
    est = 4 * blk + w_bytes + inter + 3 * L * L * 4
    vmem_limit = int(min(0.72 * _vmem_capacity_bytes(),
                         max(32 * 2 ** 20, 2 * est)))

    # TODO(synk): for N == 1 on v7x, add a query-row tile grid axis (flash-style
    # with staged K/V) so both TensorCores get work; grid=(N,) is N-way only.
    out2d = pl.pallas_call(
        _gated_sf_block_kernel,
        out_shape=jax.ShapeDtypeStruct((L, N * E), feature.dtype),
        grid=(N,),
        in_specs=[pl.BlockSpec((L, E), lambda n: (0, n))]
                 + [_resident_spec(w.shape) for w in weights],
        out_specs=pl.BlockSpec((L, E), lambda n: (0, n)),
        scratch_shapes=[pltpu.VMEM((L, E), jnp.bfloat16)],   # per-head output buffer
        compiler_params=pltpu.CompilerParams(
            dimension_semantics=("parallel",),
            vmem_limit_bytes=vmem_limit),
    )(x2d, *weights)

    return out2d.reshape(L, N, E)


def reference(feature, p):
    """Pure-JAX (f32) mirror of the PyTorch GatedSFAttentionBlock.forward."""
    L, N, E = feature.shape
    H, D = E // HEAD_DIM, HEAD_DIM

    def ln(v, w, b):
        mu = v.mean(-1, keepdims=True)
        var = ((v - mu) ** 2).mean(-1, keepdims=True)
        return (v - mu) / jnp.sqrt(var + LN_EPS) * w + b

    h = ln(feature, p["ln1_w"], p["ln1_b"])
    qkv = h @ p["in_proj_w"].T + p["in_proj_b"]
    q, k, v = jnp.split(qkv, 3, axis=-1)
    qh = q.reshape(L, N, H, D) / np.sqrt(D)
    kh = k.reshape(L, N, H, D)
    vh = v.reshape(L, N, H, D)
    s = jnp.einsum("qnhd,knhd->nhqk", qh, kh)
    w = jax.nn.softmax(s, axis=-1)
    a = jnp.einsum("nhqk,knhd->qnhd", w, vh).reshape(L, N, E)
    o = a @ p["out_proj_w"].T + p["out_proj_b"]
    x1 = feature + o
    m = ln(x1, p["ln2_w"], p["ln2_b"])
    h1 = m @ p["fc_w"].T + p["fc_b"]
    g = h1 * jax.nn.sigmoid(1.702 * h1)
    return x1 + g @ p["proj_w"].T + p["proj_b"]


if __name__ == "__main__":
    E = 128                 # embeding_dim (small stand-in for the 512 default)
    L, N = 16, 2            # sequence length, batch

    key = jax.random.PRNGKey(0)
    ks = jax.random.split(key, 13)
    params = {
        "ln1_w": 1.0 + 0.1 * jax.random.normal(ks[0], (E,), jnp.float32),
        "ln1_b": 0.1 * jax.random.normal(ks[1], (E,), jnp.float32),
        "ln2_w": 1.0 + 0.1 * jax.random.normal(ks[2], (E,), jnp.float32),
        "ln2_b": 0.1 * jax.random.normal(ks[3], (E,), jnp.float32),
        # nn.MultiheadAttention params
        "in_proj_w": 0.05 * jax.random.normal(ks[4], (3 * E, E), jnp.float32),
        "in_proj_b": 0.05 * jax.random.normal(ks[5], (3 * E,), jnp.float32),
        "out_proj_w": 0.05 * jax.random.normal(ks[6], (E, E), jnp.float32),
        "out_proj_b": 0.05 * jax.random.normal(ks[7], (E,), jnp.float32),
        # mlp: c_fc (E -> 4E), c_proj (4E -> E)
        "fc_w": 0.05 * jax.random.normal(ks[8], (4 * E, E), jnp.float32),
        "fc_b": 0.05 * jax.random.normal(ks[9], (4 * E,), jnp.float32),
        "proj_w": 0.05 * jax.random.normal(ks[10], (E, 4 * E), jnp.float32),
        "proj_b": 0.05 * jax.random.normal(ks[11], (E,), jnp.float32),
    }
    feature = jax.random.normal(ks[12], (L, N, E), jnp.float32)

    out = jax.block_until_ready(gated_sf_attention_block(feature, params))
    assert out.shape == (L, N, E)

    ref = reference(feature, params)
    # bf16 MXU operands (f32 accumulation) => bf16-level tolerance vs f32 ref.
    np.testing.assert_allclose(np.asarray(out), np.asarray(ref),
                               rtol=3e-2, atol=3e-2)
    print("KERNEL_OK")
</pallas_src>

<mosaic_0001>
module attributes {stable_mosaic.version = 11 : i64} {
  func.func @_gated_sf_block_kernel(%arg0: i32, %arg1: memref<16x128xf32, #tpu.memory_space<vmem>>, %arg2: memref<128x384xbf16, #tpu.memory_space<vmem>>, %arg3: memref<1x384xf32, #tpu.memory_space<vmem>>, %arg4: memref<128x128xbf16, #tpu.memory_space<vmem>>, %arg5: memref<1x128xf32, #tpu.memory_space<vmem>>, %arg6: memref<128x512xbf16, #tpu.memory_space<vmem>>, %arg7: memref<1x512xf32, #tpu.memory_space<vmem>>, %arg8: memref<512x128xbf16, #tpu.memory_space<vmem>>, %arg9: memref<1x128xf32, #tpu.memory_space<vmem>>, %arg10: memref<16x128xf32, #tpu.memory_space<vmem>>, %arg11: memref<16x128xbf16, #tpu.memory_space<vmem>>) attributes {dimension_semantics = [#tpu.dimension_semantics<parallel>], iteration_bounds = array<i64: 2>, scalar_prefetch = 0 : i64, scratch_operands = 1 : i64, tpu.core_type = #tpu.core_type<tc>, window_params = [{transform_indices = @transform_0, window_bounds = array<i64: 16, 128>}, {pipeline_mode = #tpu.pipeline_mode<synchronous>, transform_indices = @transform_1, window_bounds = array<i64: 128, 384>}, {pipeline_mode = #tpu.pipeline_mode<synchronous>, transform_indices = @transform_2, window_bounds = array<i64: 1, 384>}, {pipeline_mode = #tpu.pipeline_mode<synchronous>, transform_indices = @transform_3, window_bounds = array<i64: 128, 128>}, {pipeline_mode = #tpu.pipeline_mode<synchronous>, transform_indices = @transform_4, window_bounds = array<i64: 1, 128>}, {pipeline_mode = #tpu.pipeline_mode<synchronous>, transform_indices = @transform_5, window_bounds = array<i64: 128, 512>}, {pipeline_mode = #tpu.pipeline_mode<synchronous>, transform_indices = @transform_6, window_bounds = array<i64: 1, 512>}, {pipeline_mode = #tpu.pipeline_mode<synchronous>, transform_indices = @transform_7, window_bounds = array<i64: 512, 128>}, {pipeline_mode = #tpu.pipeline_mode<synchronous>, transform_indices = @transform_8, window_bounds = array<i64: 1, 128>}, {transform_indices = @transform_9, window_bounds = array<i64: 16, 128>}]} {
    %c0 = arith.constant 0 : index
    %c0_0 = arith.constant 0 : index
    %0 = vector.load %arg1[%c0, %c0_0] : memref<16x128xf32, #tpu.memory_space<vmem>>, vector<16x128xf32>
    %cst = arith.constant dense<0.000000e+00> : vector<16xf32>
    %1 = vector.multi_reduction <add>, %0, %cst [1] : vector<16x128xf32> to vector<16xf32>
    %2 = vector.shape_cast %1 : vector<16xf32> to vector<16x1xf32>
    %cst_1 = arith.constant 1.280000e+02 : f32
    %3 = vector.broadcast %cst_1 : f32 to vector<16x1xf32>
    %4 = arith.divf %2, %3 : vector<16x1xf32>
    %5 = arith.mulf %0, %0 : vector<16x128xf32>
    %cst_2 = arith.constant dense<0.000000e+00> : vector<16xf32>
    %6 = vector.multi_reduction <add>, %5, %cst_2 [1] : vector<16x128xf32> to vector<16xf32>
    %7 = vector.shape_cast %6 : vector<16xf32> to vector<16x1xf32>
    %cst_3 = arith.constant 1.280000e+02 : f32
    %8 = vector.broadcast %cst_3 : f32 to vector<16x1xf32>
    %9 = arith.divf %7, %8 : vector<16x1xf32>
    %10 = arith.mulf %4, %4 : vector<16x1xf32>
    %11 = arith.subf %9, %10 : vector<16x1xf32>
    %12 = vector.broadcast %4 : vector<16x1xf32> to vector<16x128xf32>
    %13 = arith.subf %0, %12 : vector<16x128xf32>
    %cst_4 = arith.constant 9.99999974E-6 : f32
    %14 = vector.broadcast %cst_4 : f32 to vector<16x1xf32>
    %15 = arith.addf %11, %14 : vector<16x1xf32>
    %16 = math.rsqrt %15 : vector<16x1xf32>
    %17 = vector.broadcast %16 : vector<16x1xf32> to vector<16x128xf32>
    %18 = arith.mulf %13, %17 : vector<16x128xf32>
    %19 = arith.truncf %18 : vector<16x128xf32> to vector<16x128xbf16>
    %c0_5 = arith.constant 0 : index
    %c0_6 = arith.constant 0 : index
    %20 = vector.load %arg2[%c0_5, %c0_6] : memref<128x384xbf16, #tpu.memory_space<vmem>>, vector<128x384xbf16>
    %cst_7 = arith.constant dense<0.000000e+00> : vector<16x384xf32>
    %21 = tpu.matmul %19, %20, %cst_7 {dimension_numbers = #tpu.dot_dimension_numbers<[1], [0], [0], [1], [0, 0, 1, 1], [], []>} : vector<16x128xbf16>, vector<128x384xbf16>, vector<16x384xf32> -> vector<16x384xf32>
    %c0_8 = arith.constant 0 : index
    %c0_9 = arith.constant 0 : index
    %22 = vector.load %arg3[%c0_8, %c0_9] : memref<1x384xf32, #tpu.memory_space<vmem>>, vector<1x384xf32>
    %23 = vector.broadcast %22 : vector<1x384xf32> to vector<16x384xf32>
    %24 = arith.addf %21, %23 : vector<16x384xf32>
    %25 = arith.truncf %24 : vector<16x384xf32> to vector<16x384xbf16>
    %26 = vector.extract_strided_slice %25 {offsets = [0, 0], sizes = [16, 64], strides = [1, 1]} : vector<16x384xbf16> to vector<16x64xbf16>
    %27 = vector.extract_strided_slice %25 {offsets = [0, 128], sizes = [16, 64], strides = [1, 1]} : vector<16x384xbf16> to vector<16x64xbf16>
    %28 = vector.extract_strided_slice %25 {offsets = [0, 256], sizes = [16, 64], strides = [1, 1]} : vector<16x384xbf16> to vector<16x64xbf16>
    %cst_10 = arith.constant dense<0.000000e+00> : vector<16x16xf32>
    %29 = tpu.matmul %26, %27, %cst_10 {dimension_numbers = #tpu.dot_dimension_numbers<[1], [1], [0], [0], [0, 0, 1, 0], [], []>} : vector<16x64xbf16>, vector<16x64xbf16>, vector<16x16xf32> -> vector<16x16xf32>
    %cst_11 = arith.constant dense<0xFF800000> : vector<16xf32>
    %30 = vector.multi_reduction <maximumf>, %29, %cst_11 [1] : vector<16x16xf32> to vector<16xf32>
    %31 = vector.shape_cast %30 : vector<16xf32> to vector<16x1xf32>
    %32 = vector.broadcast %31 : vector<16x1xf32> to vector<16x16xf32>
    %33 = arith.subf %29, %32 : vector<16x16xf32>
    %34 = math.exp %33 : vector<16x16xf32>
    %cst_12 = arith.constant dense<0.000000e+00> : vector<16xf32>
    %35 = vector.multi_reduction <add>, %34, %cst_12 [1] : vector<16x16xf32> to vector<16xf32>
    %36 = vector.shape_cast %35 : vector<16xf32> to vector<16x1xf32>
    %37 = arith.truncf %34 : vector<16x16xf32> to vector<16x16xbf16>
    %cst_13 = arith.constant dense<0.000000e+00> : vector<16x64xf32>
    %38 = tpu.matmul %37, %28, %cst_13 {dimension_numbers = #tpu.dot_dimension_numbers<[1], [0], [0], [1], [0, 0, 1, 1], [], []>} : vector<16x16xbf16>, vector<16x64xbf16>, vector<16x64xf32> -> vector<16x64xf32>
    %39 = tpu.reciprocal %36 {approx = true} : vector<16x1xf32> -> vector<16x1xf32>
    %40 = vector.broadcast %39 : vector<16x1xf32> to vector<16x64xf32>
    %41 = arith.mulf %38, %40 : vector<16x64xf32>
    %42 = arith.truncf %41 : vector<16x64xf32> to vector<16x64xbf16>
    %c0_14 = arith.constant 0 : index
    %c0_15 = arith.constant 0 : index
    %43 = vector.load %arg11[%c0_14, %c0_15] : memref<16x128xbf16, #tpu.memory_space<vmem>>, vector<16x64xbf16>
    tpu.vector_store %arg11[%c0_14, %c0_15], %42 {strides = array<i32>} : memref<16x128xbf16, #tpu.memory_space<vmem>>, vector<16x64xbf16>,
    %44 = vector.extract_strided_slice %25 {offsets = [0, 64], sizes = [16, 64], strides = [1, 1]} : vector<16x384xbf16> to vector<16x64xbf16>
    %45 = vector.extract_strided_slice %25 {offsets = [0, 192], sizes = [16, 64], strides = [1, 1]} : vector<16x384xbf16> to vector<16x64xbf16>
    %46 = vector.extract_strided_slice %25 {offsets = [0, 320], sizes = [16, 64], strides = [1, 1]} : vector<16x384xbf16> to vector<16x64xbf16>
    %cst_16 = arith.constant dense<0.000000e+00> : vector<16x16xf32>
    %47 = tpu.matmul %44, %45, %cst_16 {dimension_numbers = #tpu.dot_dimension_numbers<[1], [1], [0], [0], [0, 0, 1, 0], [], []>} : vector<16x64xbf16>, vector<16x64xbf16>, vector<16x16xf32> -> vector<16x16xf32>
    %cst_17 = arith.constant dense<0xFF800000> : vector<16xf32>
    %48 = vector.multi_reduction <maximumf>, %47, %cst_17 [1] : vector<16x16xf32> to vector<16xf32>
    %49 = vector.shape_cast %48 : vector<16xf32> to vector<16x1xf32>
    %50 = vector.broadcast %49 : vector<16x1xf32> to vector<16x16xf32>
    %51 = arith.subf %47, %50 : vector<16x16xf32>
    %52 = math.exp %51 : vector<16x16xf32>
    %cst_18 = arith.constant dense<0.000000e+00> : vector<16xf32>
    %53 = vector.multi_reduction <add>, %52, %cst_18 [1] : vector<16x16xf32> to vector<16xf32>
    %54 = vector.shape_cast %53 : vector<16xf32> to vector<16x1xf32>
    %55 = arith.truncf %52 : vector<16x16xf32> to vector<16x16xbf16>
    %cst_19 = arith.constant dense<0.000000e+00> : vector<16x64xf32>
    %56 = tpu.matmul %55, %46, %cst_19 {dimension_numbers = #tpu.dot_dimension_numbers<[1], [0], [0], [1], [0, 0, 1, 1], [], []>} : vector<16x16xbf16>, vector<16x64xbf16>, vector<16x64xf32> -> vector<16x64xf32>
    %57 = tpu.reciprocal %54 {approx = true} : vector<16x1xf32> -> vector<16x1xf32>
    %58 = vector.broadcast %57 : vector<16x1xf32> to vector<16x64xf32>
    %59 = arith.mulf %56, %58 : vector<16x64xf32>
    %60 = arith.truncf %59 : vector<16x64xf32> to vector<16x64xbf16>
    %c0_20 = arith.constant 0 : index
    %c64 = arith.constant 64 : index
    %61 = vector.load %arg11[%c0_20, %c64] : memref<16x128xbf16, #tpu.memory_space<vmem>>, vector<16x64xbf16>
    tpu.vector_store %arg11[%c0_20, %c64], %60 {strides = array<i32>} : memref<16x128xbf16, #tpu.memory_space<vmem>>, vector<16x64xbf16>,
    %c0_21 = arith.constant 0 : index
    %c0_22 = arith.constant 0 : index
    %62 = vector.load %arg11[%c0_21, %c0_22] : memref<16x128xbf16, #tpu.memory_space<vmem>>, vector<16x128xbf16>
    %c0_23 = arith.constant 0 : index
    %c0_24 = arith.constant 0 : index
    %63 = vector.load %arg4[%c0_23, %c0_24] : memref<128x128xbf16, #tpu.memory_space<vmem>>, vector<128x128xbf16>
    %cst_25 = arith.constant dense<0.000000e+00> : vector<16x128xf32>
    %64 = tpu.matmul %62, %63, %cst_25 {dimension_numbers = #tpu.dot_dimension_numbers<[1], [0], [0], [1], [0, 0, 1, 1], [], []>} : vector<16x128xbf16>, vector<128x128xbf16>, vector<16x128xf32> -> vector<16x128xf32>
    %65 = arith.addf %0, %64 : vector<16x128xf32>
    %c0_26 = arith.constant 0 : index
    %c0_27 = arith.constant 0 : index
    %66 = vector.load %arg5[%c0_26, %c0_27] : memref<1x128xf32, #tpu.memory_space<vmem>>, vector<1x128xf32>
    %67 = vector.broadcast %66 : vector<1x128xf32> to vector<16x128xf32>
    %68 = arith.addf %65, %67 : vector<16x128xf32>
    %cst_28 = arith.constant dense<0.000000e+00> : vector<16xf32>
    %69 = vector.multi_reduction <add>, %68, %cst_28 [1] : vector<16x128xf32> to vector<16xf32>
    %70 = vector.shape_cast %69 : vector<16xf32> to vector<16x1xf32>
    %cst_29 = arith.constant 1.280000e+02 : f32
    %71 = vector.broadcast %cst_29 : f32 to vector<16x1xf32>
    %72 = arith.divf %70, %71 : vector<16x1xf32>
    %73 = arith.mulf %68, %68 : vector<16x128xf32>
    %cst_30 = arith.constant dense<0.000000e+00> : vector<16xf32>
    %74 = vector.multi_reduction <add>, %73, %cst_30 [1] : vector<16x128xf32> to vector<16xf32>
    %75 = vector.shape_cast %74 : vector<16xf32> to vector<16x1xf32>
    %cst_31 = arith.constant 1.280000e+02 : f32
    %76 = vector.broadcast %cst_31 : f32 to vector<16x1xf32>
    %77 = arith.divf %75, %76 : vector<16x1xf32>
    %78 = arith.mulf %72, %72 : vector<16x1xf32>
    %79 = arith.subf %77, %78 : vector<16x1xf32>
    %80 = vector.broadcast %72 : vector<16x1xf32> to vector<16x128xf32>
    %81 = arith.subf %68, %80 : vector<16x128xf32>
    %cst_32 = arith.constant 9.99999974E-6 : f32
    %82 = vector.broadcast %cst_32 : f32 to vector<16x1xf32>
    %83 = arith.addf %79, %82 : vector<16x1xf32>
    %84 = math.rsqrt %83 : vector<16x1xf32>
    %85 = vector.broadcast %84 : vector<16x1xf32> to vector<16x128xf32>
    %86 = arith.mulf %81, %85 : vector<16x128xf32>
    %87 = arith.truncf %86 : vector<16x128xf32> to vector<16x128xbf16>
    %cst_33 = arith.constant 0.000000e+00 : f32
    %88 = vector.broadcast %cst_33 : f32 to vector<16x128xf32>
    %c0_34 = arith.constant 0 : index
    %c0_35 = arith.constant 0 : index
    %89 = vector.load %arg6[%c0_34, %c0_35] : memref<128x512xbf16, #tpu.memory_space<vmem>>, vector<128x512xbf16>
    %cst_36 = arith.constant dense<0.000000e+00> : vector<16x512xf32>
    %90 = tpu.matmul %87, %89, %cst_36 {dimension_numbers = #tpu.dot_dimension_numbers<[1], [0], [0], [1], [0, 0, 1, 1], [], []>} : vector<16x128xbf16>, vector<128x512xbf16>, vector<16x512xf32> -> vector<16x512xf32>
    %c0_37 = arith.constant 0 : index
    %c0_38 = arith.constant 0 : index
    %91 = vector.load %arg7[%c0_37, %c0_38] : memref<1x512xf32, #tpu.memory_space<vmem>>, vector<1x512xf32>
    %92 = vector.broadcast %91 : vector<1x512xf32> to vector<16x512xf32>
    %93 = arith.addf %90, %92 : vector<16x512xf32>
    %cst_39 = arith.constant 1.702000e+00 : f32
    %94 = vector.broadcast %cst_39 : f32 to vector<16x512xf32>
    %95 = arith.mulf %94, %93 : vector<16x512xf32>
    %96 = arith.negf %95 : vector<16x512xf32>
    %97 = math.exp %96 : vector<16x512xf32>
    %cst_40 = arith.constant 1.000000e+00 : f32
    %98 = vector.broadcast %cst_40 : f32 to vector<16x512xf32>
    %99 = arith.addf %98, %97 : vector<16x512xf32>
    %100 = arith.divf %98, %99 : vector<16x512xf32>
    %101 = arith.mulf %93, %100 : vector<16x512xf32>
    %102 = arith.truncf %101 : vector<16x512xf32> to vector<16x512xbf16>
    %c0_41 = arith.constant 0 : index
    %c0_42 = arith.constant 0 : index
    %103 = vector.load %arg8[%c0_41, %c0_42] : memref<512x128xbf16, #tpu.memory_space<vmem>>, vector<512x128xbf16>
    %cst_43 = arith.constant dense<0.000000e+00> : vector<16x128xf32>
    %104 = tpu.matmul %102, %103, %cst_43 {dimension_numbers = #tpu.dot_dimension_numbers<[1], [0], [0], [1], [0, 0, 1, 1], [], []>} : vector<16x512xbf16>, vector<512x128xbf16>, vector<16x128xf32> -> vector<16x128xf32>
    %105 = arith.addf %88, %104 : vector<16x128xf32>
    %106 = arith.addf %68, %105 : vector<16x128xf32>
    %c0_44 = arith.constant 0 : index
    %c0_45 = arith.constant 0 : index
    %107 = vector.load %arg9[%c0_44, %c0_45] : memref<1x128xf32, #tpu.memory_space<vmem>>, vector<1x128xf32>
    %108 = vector.broadcast %107 : vector<1x128xf32> to vector<16x128xf32>
    %109 = arith.addf %106, %108 : vector<16x128xf32>
    %c0_46 = arith.constant 0 : index
    %c0_47 = arith.constant 0 : index
    %110 = vector.load %arg10[%c0_46, %c0_47] : memref<16x128xf32, #tpu.memory_space<vmem>>, vector<16x128xf32>
    tpu.vector_store %arg10[%c0_46, %c0_47], %109 {strides = array<i32>} : memref<16x128xf32, #tpu.memory_space<vmem>>, vector<16x128xf32>,
    return
  }
  func.func @transform_0(%arg0: i32) -> (i32, i32) {
    %c0_i32 = arith.constant 0 : i32
    %c0_i32_0 = arith.constant 0 : i32
    return %c0_i32, %arg0 : i32, i32
  }
  func.func @transform_1(%arg0: i32) -> (i32, i32) {
    %c0_i32 = arith.constant 0 : i32
    %c0_i32_0 = arith.constant 0 : i32
    %c0_i32_1 = arith.constant 0 : i32
    return %c0_i32, %c0_i32_0 : i32, i32
  }
  func.func @transform_2(%arg0: i32) -> (i32, i32) {
    %c0_i32 = arith.constant 0 : i32
    %c0_i32_0 = arith.constant 0 : i32
    %c0_i32_1 = arith.constant 0 : i32
    return %c0_i32, %c0_i32_0 : i32, i32
  }
  func.func @transform_3(%arg0: i32) -> (i32, i32) {
    %c0_i32 = arith.constant 0 : i32
    %c0_i32_0 = arith.constant 0 : i32
    %c0_i32_1 = arith.constant 0 : i32
    return %c0_i32, %c0_i32_0 : i32, i32
  }
  func.func @transform_4(%arg0: i32) -> (i32, i32) {
    %c0_i32 = arith.constant 0 : i32
    %c0_i32_0 = arith.constant 0 : i32
    %c0_i32_1 = arith.constant 0 : i32
    return %c0_i32, %c0_i32_0 : i32, i32
  }
  func.func @transform_5(%arg0: i32) -> (i32, i32) {
    %c0_i32 = arith.constant 0 : i32
    %c0_i32_0 = arith.constant 0 : i32
    %c0_i32_1 = arith.constant 0 : i32
    return %c0_i32, %c0_i32_0 : i32, i32
  }
  func.func @transform_6(%arg0: i32) -> (i32, i32) {
    %c0_i32 = arith.constant 0 : i32
    %c0_i32_0 = arith.constant 0 : i32
    %c0_i32_1 = arith.constant 0 : i32
    return %c0_i32, %c0_i32_0 : i32, i32
  }
  func.func @transform_7(%arg0: i32) -> (i32, i32) {
    %c0_i32 = arith.constant 0 : i32
    %c0_i32_0 = arith.constant 0 : i32
    %c0_i32_1 = arith.constant 0 : i32
    return %c0_i32, %c0_i32_0 : i32, i32
  }
  func.func @transform_8(%arg0: i32) -> (i32, i32) {
    %c0_i32 = arith.constant 0 : i32
    %c0_i32_0 = arith.constant 0 : i32
    %c0_i32_1 = arith.constant 0 : i32
    return %c0_i32, %c0_i32_0 : i32, i32
  }
  func.func @transform_9(%arg0: i32) -> (i32, i32) {
    %c0_i32 = arith.constant 0 : i32
    %c0_i32_0 = arith.constant 0 : i32
    return %c0_i32, %arg0 : i32, i32
  }
}

</mosaic_0001>

<llo_original>
// kernel: tpu_custom_call.1
$region0: #{tpu_custom_call.1}
  #allocation0 [shape = 'u32[]', space=smem, size = 0x4, offset = 0x4, fixed_abs, tag = 'smem constant byte address 0x4 - core index']
  #allocation1 [shape = 'u32[144,128]{1,0:T(1,128)}', space=vmem, size = 0x12000, scoped, tag = 'internal scratch']
  #allocation2 [shape = 'bf16[16,128]{1,0:T(16,128)(2,1)}', space=vmem, size = 0x1000, scoped, tag = 'scratch operand']
  %s0 = inlined_call_operand.hbm [shape: f32[16,256], index: 0, kind: input, shape index: {}]
  %s1 = inlined_call_operand.hbm [shape: bf16[128,384], index: 1, kind: input, shape index: {}]
  %s2 = inlined_call_operand.vmem [shape: f32[1,384], index: 2, kind: input, shape index: {}]
  %s3 = inlined_call_operand.hbm [shape: bf16[128,128], index: 3, kind: input, shape index: {}]
  %s4 = inlined_call_operand.vmem [shape: f32[1,128], index: 4, kind: input, shape index: {}]
  %s5 = inlined_call_operand.hbm [shape: bf16[128,512], index: 5, kind: input, shape index: {}]
  %s6 = inlined_call_operand.vmem [shape: f32[1,512], index: 6, kind: input, shape index: {}]
  %s7 = inlined_call_operand.hbm [shape: bf16[512,128], index: 7, kind: input, shape index: {}]
  %s8 = inlined_call_operand.vmem [shape: f32[1,128], index: 8, kind: input, shape index: {}]
  %s9 = inlined_call_operand.hbm [shape: f32[16,256], index: 9, kind: output, shape index: {}]
  %s10 = sld [smem:[#allocation0]]
  $region89: #{tpu_custom_call.1} parent=0
    _
  %s12 = ssub.s32 1, %s10
  %s13 = scalar_select 0, %s12, %s10
  $region1: #{tpu_custom_call.1} parent=0
    #allocation3 [shape = 'u8[16384]{0}', space=vmem, size = 0x4000, scoped, tag = 'input window, operand 0']
    #allocation4 [shape = 's32[2]{0}', space=sflag, size = 0x8, scoped, tag = 'scoped memory for tpu_custom_call.1']
    #allocation5 [shape = 's32[2]{0}', space=sflag, size = 0x8, scoped, tag = 'scoped memory for tpu_custom_call.1']
    #allocation6 [shape = 'u8[98304]{0}', space=vmem, size = 0x18000, scoped, tag = 'input window, operand 1, single buffered']
    #allocation7 [shape = 's32[1]{0}', space=sflag, size = 0x4, scoped, tag = 'scoped memory for tpu_custom_call.1']
    #allocation8 [shape = 'u8[32768]{0}', space=vmem, size = 0x8000, scoped, tag = 'input window, operand 3, single buffered']
    #allocation9 [shape = 'u8[131072]{0}', space=vmem, size = 0x20000, scoped, tag = 'input window, operand 5, single buffered']
    #allocation10 [shape = 's32[1]{0}', space=sflag, size = 0x4, scoped, tag = 'scoped memory for tpu_custom_call.1']
    #allocation11 [shape = 'u8[131072]{0}', space=vmem, size = 0x20000, scoped, tag = 'input window, operand 7, single buffered']
    #allocation12 [shape = 'u8[16384]{0}', space=vmem, size = 0x4000, scoped, tag = 'output window, operand 0']
    %14 = vsyncpa [#allocation4], 0
    %s15 = scalar_lea.sflag [#allocation4], 1
    %16 = vsyncpa %s15, 0
    %17 = vsyncpa [#allocation7], 0
    %18 = vsyncpa [#allocation10], 0
    %19 = vsyncpa [#allocation5], 0
    %s20 = scalar_lea.sflag [#allocation5], 1
    %21 = vsyncpa %s20, 0
    loop: start=0, step=1, limit=4
    $region2: #{tpu_custom_call.1} parent=1 // loop_pre_header
      _
    $region3: #{tpu_custom_call.1} parent=1 // loop_header
      %s23 = sphi 0, %s27
      %p24 = scmp.ge.s32.totalorder %s23, 4
      %s33 = sphi 0, %s35
      %s36 = sphi 0, %s33
      %s37 = sphi 0, %s36
      %s53 = sphi 0, %s37
      %s57 = sphi 0, %s57
      %s59 = sphi 0, %s57
      %s60 = sphi 0, %s59
      %s74 = sphi 0, %s60
      %s78 = sphi 0, %s78
      %s80 = sphi 0, %s78
      %s81 = sphi 0, %s80
      %s95 = sphi 0, %s81
      %s99 = sphi 0, %s99
      %s101 = sphi 0, %s99
      %s102 = sphi 0, %s101
      %s116 = sphi 0, %s102
      %s120 = sphi 0, %s120
      %s122 = sphi 0, %s120
      %s123 = sphi 0, %s122
      %s137 = sphi 0, %s123
      %s141 = sphi 0, %s141
      %s143 = sphi 0, %s141
      %s144 = sphi 0, %s143
      %s158 = sphi 0, %s144
      %s162 = sphi 0, %s162
      %s164 = sphi 0, %s162
      %s165 = sphi 0, %s164
      %s179 = sphi 0, %s165
      %s183 = sphi 0, %s183
      %s185 = sphi 0, %s183
      %s186 = sphi 0, %s185
      %s200 = sphi 0, %s186
      %s204 = sphi 0, %s204
      %s206 = sphi 0, %s204
      %s207 = sphi 0, %s206
      %s221 = sphi 0, %s207
      %s227 = sphi 0, %s229
      %s230 = sphi 0, %s227
      %s231 = sphi 0, %s230
      %s247 = sphi 0, %s231
    $region4: #{tpu_custom_call.1} parent=1 // loop_header_branch
      %26 = sbr.rel (%p24) target = $region8
    $region5: #{tpu_custom_call.1} parent=1 // loop_body
      %s28 = ssub.s32 %s23, 1
      %s29 = ssub.s32 %s23, 2
      %s30 = sadd.s32 %s23, 1
      %s31 = ssub.s32 %s23, %s30
      %p32 = scmp.eq.s32.totalorder %s31, 0
      %s34 = sadd.s32 %s33, 1
      %s35 = scalar_select %p32, %s33, %s34
      %p38 = pneg %p32
      %p39 = scmp.eq.s32.totalorder %s23, 1
      %p40 = por %p38, %p39
      %p41 = scmp.ne.s32.totalorder %s33, %s36
      %p42 = scmp.eq.s32.totalorder %s23, 0
      %p43 = por %p41, %p42
      %p44 = scmp.ne.s32.totalorder %s33, %s36
      %p45 = scmp.eq.s32.totalorder %s28, 1
      %p46 = por %p44, %p45
      %p47 = scmp.ne.s32.totalorder %s36, %s37
      %p48 = scmp.eq.s32.totalorder %s28, 0
      %p49 = por %p47, %p48
      %p50 = scmp.ne.s32.totalorder %s36, %s37
      %p51 = scmp.eq.s32.totalorder %s29, 1
      %p52 = por %p50, %p51
      %p54 = scmp.ne.s32.totalorder %s37, %s53
      %p55 = scmp.eq.s32.totalorder %s29, 0
      %p56 = por %p54, %p55
      %s58 = sadd.s32 %s57, 1
      %p61 = scmp.eq.s32.totalorder %s23, 1
      %p62 = scmp.ne.s32.totalorder %s57, %s59
      %p63 = scmp.eq.s32.totalorder %s23, 0
      %p64 = por %p62, %p63
      %p65 = scmp.ne.s32.totalorder %s57, %s59
      %p66 = scmp.eq.s32.totalorder %s28, 1
      %p67 = por %p65, %p66
      %p68 = scmp.ne.s32.totalorder %s59, %s60
      %p69 = scmp.eq.s32.totalorder %s28, 0
      %p70 = por %p68, %p69
      %p71 = scmp.ne.s32.totalorder %s59, %s60
      %p72 = scmp.eq.s32.totalorder %s29, 1
      %p73 = por %p71, %p72
      %p75 = scmp.ne.s32.totalorder %s60, %s74
      %p76 = scmp.eq.s32.totalorder %s29, 0
      %p77 = por %p75, %p76
      %s79 = sadd.s32 %s78, 1
      %p82 = scmp.eq.s32.totalorder %s23, 1
      %p83 = scmp.ne.s32.totalorder %s78, %s80
      %p84 = scmp.eq.s32.totalorder %s23, 0
      %p85 = por %p83, %p84
      %p86 = scmp.ne.s32.totalorder %s78, %s80
      %p87 = scmp.eq.s32.totalorder %s28, 1
      %p88 = por %p86, %p87
      %p89 = scmp.ne.s32.totalorder %s80, %s81
      %p90 = scmp.eq.s32.totalorder %s28, 0
      %p91 = por %p89, %p90
      %p92 = scmp.ne.s32.totalorder %s80, %s81
      %p93 = scmp.eq.s32.totalorder %s29, 1
      %p94 = por %p92, %p93
      %p96 = scmp.ne.s32.totalorder %s81, %s95
      %p97 = scmp.eq.s32.totalorder %s29, 0
      %p98 = por %p96, %p97
      %s100 = sadd.s32 %s99, 1
      %p103 = scmp.eq.s32.totalorder %s23, 1
      %p104 = scmp.ne.s32.totalorder %s99, %s101
      %p105 = scmp.eq.s32.totalorder %s23, 0
      %p106 = por %p104, %p105
      %p107 = scmp.ne.s32.totalorder %s99, %s101
      %p108 = scmp.eq.s32.totalorder %s28, 1
      %p109 = por %p107, %p108
      %p110 = scmp.ne.s32.totalorder %s101, %s102
      %p111 = scmp.eq.s32.totalorder %s28, 0
      %p112 = por %p110, %p111
      %p113 = scmp.ne.s32.totalorder %s101, %s102
      %p114 = scmp.eq.s32.totalorder %s29, 1
      %p115 = por %p113, %p114
      %p117 = scmp.ne.s32.totalorder %s102, %s116
      %p118 = scmp.eq.s32.totalorder %s29, 0
      %p119 = por %p117, %p118
      %s121 = sadd.s32 %s120, 1
      %p124 = scmp.eq.s32.totalorder %s23, 1
      %p125 = scmp.ne.s32.totalorder %s120, %s122
      %p126 = scmp.eq.s32.totalorder %s23, 0
      %p127 = por %p125, %p126
      %p128 = scmp.ne.s32.totalorder %s120, %s122
      %p129 = scmp.eq.s32.totalorder %s28, 1
      %p130 = por %p128, %p129
      %p131 = scmp.ne.s32.totalorder %s122, %s123
      %p132 = scmp.eq.s32.totalorder %s28, 0
      %p133 = por %p131, %p132
      %p134 = scmp.ne.s32.totalorder %s122, %s123
      %p135 = scmp.eq.s32.totalorder %s29, 1
      %p136 = por %p134, %p135
      %p138 = scmp.ne.s32.totalorder %s123, %s137
      %p139 = scmp.eq.s32.totalorder %s29, 0
      %p140 = por %p138, %p139
      %s142 = sadd.s32 %s141, 1
      %p145 = scmp.eq.s32.totalorder %s23, 1
      %p146 = scmp.ne.s32.totalorder %s141, %s143
      %p147 = scmp.eq.s32.totalorder %s23, 0
      %p148 = por %p146, %p147
      %p149 = scmp.ne.s32.totalorder %s141, %s143
      %p150 = scmp.eq.s32.totalorder %s28, 1
      %p151 = por %p149, %p150
      %p152 = scmp.ne.s32.totalorder %s143, %s144
      %p153 = scmp.eq.s32.totalorder %s28, 0
      %p154 = por %p152, %p153
      %p155 = scmp.ne.s32.totalorder %s143, %s144
      %p156 = scmp.eq.s32.totalorder %s29, 1
      %p157 = por %p155, %p156
      %p159 = scmp.ne.s32.totalorder %s144, %s158
      %p160 = scmp.eq.s32.totalorder %s29, 0
      %p161 = por %p159, %p160
      %s163 = sadd.s32 %s162, 1
      %p166 = scmp.eq.s32.totalorder %s23, 1
      %p167 = scmp.ne.s32.totalorder %s162, %s164
      %p168 = scmp.eq.s32.totalorder %s23, 0
      %p169 = por %p167, %p168
      %p170 = scmp.ne.s32.totalorder %s162, %s164
      %p171 = scmp.eq.s32.totalorder %s28, 1
      %p172 = por %p170, %p171
      %p173 = scmp.ne.s32.totalorder %s164, %s165
      %p174 = scmp.eq.s32.totalorder %s28, 0
      %p175 = por %p173, %p174
      %p176 = scmp.ne.s32.totalorder %s164, %s165
      %p177 = scmp.eq.s32.totalorder %s29, 1
      %p178 = por %p176, %p177
      %p180 = scmp.ne.s32.totalorder %s165, %s179
      %p181 = scmp.eq.s32.totalorder %s29, 0
      %p182 = por %p180, %p181
      %s184 = sadd.s32 %s183, 1
      %p187 = scmp.eq.s32.totalorder %s23, 1
      %p188 = scmp.ne.s32.totalorder %s183, %s185
      %p189 = scmp.eq.s32.totalorder %s23, 0
      %p190 = por %p188, %p189
      %p191 = scmp.ne.s32.totalorder %s183, %s185
      %p192 = scmp.eq.s32.totalorder %s28, 1
      %p193 = por %p191, %p192
      %p194 = scmp.ne.s32.totalorder %s185, %s186
      %p195 = scmp.eq.s32.totalorder %s28, 0
      %p196 = por %p194, %p195
      %p197 = scmp.ne.s32.totalorder %s185, %s186
      %p198 = scmp.eq.s32.totalorder %s29, 1
      %p199 = por %p197, %p198
      %p201 = scmp.ne.s32.totalorder %s186, %s200
      %p202 = scmp.eq.s32.totalorder %s29, 0
      %p203 = por %p201, %p202
      %s205 = sadd.s32 %s204, 1
      %p208 = scmp.eq.s32.totalorder %s23, 1
      %p209 = scmp.ne.s32.totalorder %s204, %s206
      %p210 = scmp.eq.s32.totalorder %s23, 0
      %p211 = por %p209, %p210
      %p212 = scmp.ne.s32.totalorder %s204, %s206
      %p213 = scmp.eq.s32.totalorder %s28, 1
      %p214 = por %p212, %p213
      %p215 = scmp.ne.s32.totalorder %s206, %s207
      %p216 = scmp.eq.s32.totalorder %s28, 0
      %p217 = por %p215, %p216
      %p218 = scmp.ne.s32.totalorder %s206, %s207
      %p219 = scmp.eq.s32.totalorder %s29, 1
      %p220 = por %p218, %p219
      %p222 = scmp.ne.s32.totalorder %s207, %s221
      %p223 = scmp.eq.s32.totalorder %s29, 0
      %p224 = por %p222, %p223
      %s225 = ssub.s32 %s23, %s30
      %p226 = scmp.eq.s32.totalorder %s225, 0
      %s228 = sadd.s32 %s227, 1
      %s229 = scalar_select %p226, %s227, %s228
      %p232 = pneg %p226
      %p233 = scmp.eq.s32.totalorder %s23, 1
      %p234 = por %p232, %p233
      %p235 = scmp.ne.s32.totalorder %s227, %s230
      %p236 = scmp.eq.s32.totalorder %s23, 0
      %p237 = por %p235, %p236
      %p238 = scmp.ne.s32.totalorder %s227, %s230
      %p239 = scmp.eq.s32.totalorder %s28, 1
      %p240 = por %p238, %p239
      %p241 = scmp.ne.s32.totalorder %s230, %s231
      %p242 = scmp.eq.s32.totalorder %s28, 0
      %p243 = por %p241, %p242
      %p244 = scmp.ne.s32.totalorder %s230, %s231
      %p245 = scmp.eq.s32.totalorder %s29, 1
      %p246 = por %p244, %p245
      %p248 = scmp.ne.s32.totalorder %s231, %s247
      %p249 = scmp.eq.s32.totalorder %s29, 0
      %p250 = por %p248, %p249
      %p251 = scmp.le.s32.totalorder 1, %s23
      %p252 = scmp.lt.s32.totalorder %s23, 3
      %p253 = pnand %p251, %p252
      %p254 = pneg %p253
      // Predicated region
      $region9: #{tpu_custom_call.1} parent=5 // pred_check
        _
      $region10: #{tpu_custom_call.1} parent=5 // pred_check_branch
        %256 = sbr.rel (%p253) target = $region12
      $region11: #{tpu_custom_call.1} parent=5 // pred_region
        %s257 = ssub.s32 %s23, 1
        // Predicated region
        $region13: #{tpu_custom_call.1} parent=11 // pred_check
          %p258 = pneg %p70
        $region14: #{tpu_custom_call.1} parent=11 // pred_check_branch
          %260 = sbr.rel (%p258) target = $region16
        $region15: #{tpu_custom_call.1} parent=11 // pred_region
          %s262 = ssub.s32 3072, 3072
          %263 = vsyncadd [#allocation7], %s262
          %s264 = sshll.u32 [#allocation6], 4
          %s265 = int_to_ptr.vmem [resolvable:$true] %s264
          %270 = dma.hbm_to_vmem [thread:$0]  %s1, 3072, %s265, [#allocation7], 192, 192, 12
        $region16: #{tpu_custom_call.1} parent=11 // pred_fallthru
          _
        // Predicated region
        $region17: #{tpu_custom_call.1} parent=11 // pred_check
          %p271 = pneg %p91
        $region18: #{tpu_custom_call.1} parent=11 // pred_check_branch
          %273 = sbr.rel (%p271) target = $region20
        $region19: #{tpu_custom_call.1} parent=11 // pred_region
          _
        $region20: #{tpu_custom_call.1} parent=11 // pred_fallthru
          _
        // Predicated region
        $region21: #{tpu_custom_call.1} parent=11 // pred_check
          %p274 = pneg %p112
        $region22: #{tpu_custom_call.1} parent=11 // pred_check_branch
          %276 = sbr.rel (%p274) target = $region24
        $region23: #{tpu_custom_call.1} parent=11 // pred_region
          %s278 = ssub.s32 1024, 1024
          %279 = vsyncadd [#allocation7], %s278
          %s280 = sshll.u32 [#allocation8], 4
          %s281 = int_to_ptr.vmem [resolvable:$true] %s280
          %286 = dma.hbm_to_vmem [thread:$0]  %s3, 1024, %s281, [#allocation7], 64, 64, 4
        $region24: #{tpu_custom_call.1} parent=11 // pred_fallthru
          _
        // Predicated region
        $region25: #{tpu_custom_call.1} parent=11 // pred_check
          %p287 = pneg %p133
        $region26: #{tpu_custom_call.1} parent=11 // pred_check_branch
          %289 = sbr.rel (%p287) target = $region28
        $region27: #{tpu_custom_call.1} parent=11 // pred_region
          _
        $region28: #{tpu_custom_call.1} parent=11 // pred_fallthru
          _
        // Predicated region
        $region29: #{tpu_custom_call.1} parent=11 // pred_check
          %p290 = pneg %p154
        $region30: #{tpu_custom_call.1} parent=11 // pred_check_branch
          %292 = sbr.rel (%p290) target = $region32
        $region31: #{tpu_custom_call.1} parent=11 // pred_region
          %s294 = ssub.s32 4096, 4096
          %295 = vsyncadd [#allocation10], %s294
          %s296 = sshll.u32 [#allocation9], 4
          %s297 = int_to_ptr.vmem [resolvable:$true] %s296
          %302 = dma.hbm_to_vmem [thread:$0]  %s5, 4096, %s297, [#allocation10], 256, 256, 16
        $region32: #{tpu_custom_call.1} parent=11 // pred_fallthru
          _
        // Predicated region
        $region33: #{tpu_custom_call.1} parent=11 // pred_check
          %p303 = pneg %p175
        $region34: #{tpu_custom_call.1} parent=11 // pred_check_branch
          %305 = sbr.rel (%p303) target = $region36
        $region35: #{tpu_custom_call.1} parent=11 // pred_region
          _
        $region36: #{tpu_custom_call.1} parent=11 // pred_fallthru
          _
        // Predicated region
        $region37: #{tpu_custom_call.1} parent=11 // pred_check
          %p306 = pneg %p196
        $region38: #{tpu_custom_call.1} parent=11 // pred_check_branch
          %308 = sbr.rel (%p306) target = $region40
        $region39: #{tpu_custom_call.1} parent=11 // pred_region
          %s310 = ssub.s32 4096, 4096
          %311 = vsyncadd [#allocation10], %s310
          %s312 = sshll.u32 [#allocation11], 4
          %s313 = int_to_ptr.vmem [resolvable:$true] %s312
          %318 = dma.hbm_to_vmem [thread:$0]  %s7, 4096, %s313, [#allocation10], 64, 64, 4
        $region40: #{tpu_custom_call.1} parent=11 // pred_fallthru
          _
        // Predicated region
        $region41: #{tpu_custom_call.1} parent=11 // pred_check
          %p319 = pneg %p217
        $region42: #{tpu_custom_call.1} parent=11 // pred_check_branch
          %321 = sbr.rel (%p319) target = $region44
        $region43: #{tpu_custom_call.1} parent=11 // pred_region
          _
        $region44: #{tpu_custom_call.1} parent=11 // pred_fallthru
          _
      $region12: #{tpu_custom_call.1} parent=5 // pred_fallthru
        _
      %p322 = scmp.lt.s32.totalorder %s23, 2
      // Predicated region
      $region45: #{tpu_custom_call.1} parent=5 // pred_check
        %p323 = pneg %p322
      $region46: #{tpu_custom_call.1} parent=5 // pred_check_branch
        %325 = sbr.rel (%p323) target = $region48
      $region47: #{tpu_custom_call.1} parent=5 // pred_region
        // Predicated region
        $region49: #{tpu_custom_call.1} parent=47 // pred_check
          %p326 = pneg %p43
        $region50: #{tpu_custom_call.1} parent=47 // pred_check_branch
          %328 = sbr.rel (%p326) target = $region52
        $region51: #{tpu_custom_call.1} parent=47 // pred_region
          %s329 = sand.u32 %s33, 1
          %s330 = scalar_lea.sflag [#allocation4], %s329
          %s331 = sand.u32 %s33, 1
          %s332 = smul.addr %s331, 16
          %s333 = scalar_lea.vmem [#allocation3], %s332
          %s335 = ssub.s32 256, 256
          %336 = vsyncadd %s330, %s335
          %s337 = smul.addr %s23, 128
          %s338 = scalar_lea.hbm %s0, %s337
          %s339 = sshll.u32 %s333, 4
          %s340 = int_to_ptr.vmem [resolvable:$true] %s339
          %345 = dma.hbm_to_vmem [thread:$0]  %s338, 256, %s340, %s330, 256, 128, 8
        $region52: #{tpu_custom_call.1} parent=47 // pred_fallthru
          _
      $region48: #{tpu_custom_call.1} parent=5 // pred_fallthru
        _
      %p346 = scmp.le.s32.totalorder 1, %s23
      %p347 = scmp.lt.s32.totalorder %s23, 3
      %p348 = pnand %p346, %p347
      %p349 = pneg %p348
      // Predicated region
      $region53: #{tpu_custom_call.1} parent=5 // pred_check
        _
      $region54: #{tpu_custom_call.1} parent=5 // pred_check_branch
        %351 = sbr.rel (%p348) target = $region56
      $region55: #{tpu_custom_call.1} parent=5 // pred_region
        %s352 = ssub.s32 %s23, 1
        %s353 = sand.u32 %s36, 1
        %s354 = scalar_lea.sflag [#allocation4], %s353
        %s355 = sand.u32 %s36, 1
        %s356 = smul.addr %s355, 16
        %s357 = scalar_lea.vmem [#allocation3], %s356
        // Predicated region
        $region57: #{tpu_custom_call.1} parent=55 // pred_check
          %p358 = pneg %p49
        $region58: #{tpu_custom_call.1} parent=55 // pred_check_branch
          %360 = sbr.rel (%p358) target = $region60
        $region59: #{tpu_custom_call.1} parent=55 // pred_region
          %361 = dma.done %s354, 256
        $region60: #{tpu_custom_call.1} parent=55 // pred_fallthru
          _
        // Predicated region
        $region61: #{tpu_custom_call.1} parent=55 // pred_check
          %p362 = pneg %p70
        $region62: #{tpu_custom_call.1} parent=55 // pred_check_branch
          %364 = sbr.rel (%p362) target = $region64
        $region63: #{tpu_custom_call.1} parent=55 // pred_region
          %365 = dma.done [#allocation7], 3072
        $region64: #{tpu_custom_call.1} parent=55 // pred_fallthru
          _
        // Predicated region
        $region65: #{tpu_custom_call.1} parent=55 // pred_check
          %p366 = pneg %p112
        $region66: #{tpu_custom_call.1} parent=55 // pred_check_branch
          %368 = sbr.rel (%p366) target = $region68
        $region67: #{tpu_custom_call.1} parent=55 // pred_region
          %369 = dma.done [#allocation7], 1024
        $region68: #{tpu_custom_call.1} parent=55 // pred_fallthru
          _
        // Predicated region
        $region69: #{tpu_custom_call.1} parent=55 // pred_check
          %p370 = pneg %p154
        $region70: #{tpu_custom_call.1} parent=55 // pred_check_branch
          %372 = sbr.rel (%p370) target = $region72
        $region71: #{tpu_custom_call.1} parent=55 // pred_region
          %373 = dma.done [#allocation10], 4096
        $region72: #{tpu_custom_call.1} parent=55 // pred_fallthru
          _
        // Predicated region
        $region73: #{tpu_custom_call.1} parent=55 // pred_check
          %p374 = pneg %p196
        $region74: #{tpu_custom_call.1} parent=55 // pred_check_branch
          %376 = sbr.rel (%p374) target = $region76
        $region75: #{tpu_custom_call.1} parent=55 // pred_region
          %377 = dma.done [#allocation10], 4096
        $region76: #{tpu_custom_call.1} parent=55 // pred_fallthru
          _
        %s378 = sand.u32 %s36, 1
        %s379 = scalar_lea.sflag [#allocation4], %s378
        %s380 = sand.u32 %s36, 1
        %s381 = smul.addr %s380, 16
        %s382 = scalar_lea.vmem [#allocation3], %s381
        %p383 = pneg %p49
        %p384 = pneg %p46
        %p385 = pneg %p70
        %p386 = pneg %p67
        %p387 = pneg %p91
        %p388 = pneg %p88
        %p389 = pneg %p112
        %p390 = pneg %p109
        %p391 = pneg %p133
        %p392 = pneg %p130
        %p393 = pneg %p154
        %p394 = pneg %p151
        %p395 = pneg %p175
        %p396 = pneg %p172
        %p397 = pneg %p196
        %p398 = pneg %p193
        %p399 = pneg %p217
        %p400 = pneg %p214
        %p401 = pneg %p243
        %p402 = pneg %p240
        %s403 = sand.u32 %s230, 1
        %s404 = scalar_lea.sflag [#allocation5], %s403
        %s405 = sand.u32 %s230, 1
        %s406 = smul.addr %s405, 16
        %s407 = scalar_lea.vmem [#allocation12], %s406
        %v409 = vld [vmem:[%s357] sm:$0xff]
        %v410 = vld [vmem:[%s357 + $0x8] sm:$0xff]
        %411 = vadd.xlane.f32.xlu0 %v409
        %v412 = vpop.xlane.xlu0 %411
        %413 = vadd.xlane.f32.xlu0 %v410
        %v414 = vpop.xlane.xlu0 %413
        %v415 = vrcp.pop 128.0
        %v416 = vmul.f32 %v412, %v415
        %v417 = vmul.f32 %v414, %v415
        %v418 = vmul.f32 %v409, %v409
        %v419 = vmul.f32 %v410, %v410
        %420 = vadd.xlane.f32.xlu0 %v418
        %v421 = vpop.xlane.xlu0 %420
        %422 = vadd.xlane.f32.xlu0 %v419
        %v423 = vpop.xlane.xlu0 %422
        %v424 = vmul.f32 %v421, %v415
        %v425 = vmul.f32 %v423, %v415
        %v426 = vmul.f32 %v416, %v416
        %v427 = vmul.f32 %v417, %v417
        %v428 = vsub.f32 %v424, %v426
        %v429 = vsub.f32 %v425, %v427
        %v430 = vsub.f32 %v409, %v416
        %v431 = vsub.f32 %v410, %v417
        %v432 = vadd.f32 %v428, 1e-05
        %v433 = vadd.f32 %v429, 1e-05
        %v434 = vrsqrt.pop %v432
        %v435 = vrsqrt.pop %v433
        %v436 = vmul.f32 %v430, %v434
        %v437 = vmul.f32 %v431, %v435
        %v438 = vpack.c.bf16 %v437, %v436
        %v439 = vld [vmem:[#allocation6] sm:$0xff]
        %v440 = vld [vmem:[#allocation6 + $0x8] sm:$0xf]
        %v441 = vld [vmem:[#allocation6 + $0xc] sm:$0xff]
        %v442 = vld [vmem:[#allocation6 + $0x14] sm:$0xf]
        %v443 = vld [vmem:[#allocation6 + $0x18] sm:$0xff]
        %v444 = vld [vmem:[#allocation6 + $0x20] sm:$0xf]
        %v445 = vld [vmem:[#allocation6 + $0x24] sm:$0xff]
        %v446 = vld [vmem:[#allocation6 + $0x2c] sm:$0xf]
        %v447 = vld [vmem:[#allocation6 + $0x30] sm:$0xff]
        %v448 = vld [vmem:[#allocation6 + $0x38] sm:$0xf]
        %v449 = vld [vmem:[#allocation6 + $0x3c] sm:$0xff]
        %v450 = vld [vmem:[#allocation6 + $0x44] sm:$0xf]
        %v451 = vld [vmem:[#allocation6 + $0x48] sm:$0xff]
        %v452 = vld [vmem:[#allocation6 + $0x50] sm:$0xf]
        %v453 = vld [vmem:[#allocation6 + $0x54] sm:$0xff]
        %v454 = vld [vmem:[#allocation6 + $0x5c] sm:$0xf]
        %v455 = vld [vmem:[#allocation6 + $0x60] sm:$0xff]
        %v456 = vld [vmem:[#allocation6 + $0x68] sm:$0xf]
        %v457 = vld [vmem:[#allocation6 + $0x6c] sm:$0xff]
        %v458 = vld [vmem:[#allocation6 + $0x74] sm:$0xf]
        %v459 = vld [vmem:[#allocation6 + $0x78] sm:$0xff]
        %v460 = vld [vmem:[#allocation6 + $0x80] sm:$0xf]
        %v461 = vld [vmem:[#allocation6 + $0x84] sm:$0xff]
        %v462 = vld [vmem:[#allocation6 + $0x8c] sm:$0xf]
        %v463 = vld [vmem:[#allocation6 + $0x90] sm:$0xff]
        %v464 = vld [vmem:[#allocation6 + $0x98] sm:$0xf]
        %v465 = vld [vmem:[#allocation6 + $0x9c] sm:$0xff]
        %v466 = vld [vmem:[#allocation6 + $0xa4] sm:$0xf]
        %v467 = vld [vmem:[#allocation6 + $0xa8] sm:$0xff]
        %v468 = vld [vmem:[#allocation6 + $0xb0] sm:$0xf]
        %v469 = vld [vmem:[#allocation6 + $0xb4] sm:$0xff]
        %v470 = vld [vmem:[#allocation6 + $0xbc] sm:$0xf]
        %v471 = vld [vmem:[%s2] sm:$0x7]
        %v473 = vlaneseq
        %v474 = vshrl.u32 %v473, 7
        %v475 = vsub.s32 0, %v474
        %v476 = vrot.slane %v471, %v475
        %v477 = vlaneseq
        %v478 = vshrl.u32 %v477, 7
        %v479 = vsub.s32 1, %v478
        %v480 = vrot.slane %v471, %v479
        %v481 = vlaneseq
        %v482 = vshrl.u32 %v481, 7
        %v483 = vsub.s32 2, %v482
        %v484 = vrot.slane %v471, %v483
        %v520 = vunpack.c.l.b16 %v439
        %v521 = vunpack.c.h.b16 %v439
        %v522 = vunpack.c.l.b16 %v440
        %v523 = vunpack.c.l.b16 %v441
        %v524 = vunpack.c.h.b16 %v441
        %v525 = vunpack.c.l.b16 %v442
        %v526 = vunpack.c.l.b16 %v443
        %v527 = vunpack.c.h.b16 %v443
        %v528 = vunpack.c.l.b16 %v444
        %v529 = vunpack.c.l.b16 %v445
        %v530 = vunpack.c.h.b16 %v445
        %v531 = vunpack.c.l.b16 %v446
        %v532 = vunpack.c.l.b16 %v447
        %v533 = vunpack.c.h.b16 %v447
        %v534 = vunpack.c.l.b16 %v448
        %v535 = vunpack.c.l.b16 %v449
        %v536 = vunpack.c.h.b16 %v449
        %v537 = vunpack.c.l.b16 %v450
        %v538 = vunpack.c.l.b16 %v451
        %v539 = vunpack.c.h.b16 %v451
        %v540 = vunpack.c.l.b16 %v452
        %v541 = vunpack.c.l.b16 %v453
        %v542 = vunpack.c.h.b16 %v453
        %v543 = vunpack.c.l.b16 %v454
        %v544 = vunpack.c.l.b16 %v455
        %v545 = vunpack.c.h.b16 %v455
        %v546 = vunpack.c.l.b16 %v456
        %v547 = vunpack.c.l.b16 %v457
        %v548 = vunpack.c.h.b16 %v457
        %v549 = vunpack.c.l.b16 %v458
        %v550 = vunpack.c.l.b16 %v459
        %v551 = vunpack.c.h.b16 %v459
        %v552 = vunpack.c.l.b16 %v460
        %v553 = vunpack.c.l.b16 %v461
        %v554 = vunpack.c.h.b16 %v461
        %v555 = vunpack.c.l.b16 %v462
        %v556 = vunpack.c.l.b16 %v463
        %v557 = vunpack.c.h.b16 %v463
        %v558 = vunpack.c.l.b16 %v464
        %v559 = vunpack.c.l.b16 %v465
        %v560 = vunpack.c.h.b16 %v465
        %v561 = vunpack.c.l.b16 %v466
        %v562 = vunpack.c.l.b16 %v467
        %v563 = vunpack.c.h.b16 %v467
        %v564 = vunpack.c.l.b16 %v468
        %v565 = vunpack.c.l.b16 %v469
        %v566 = vunpack.c.h.b16 %v469
        %v567 = vunpack.c.l.b16 %v470
        %v568 = vpack.c.b16 %v523, %v520
        %v569 = vpack.c.b16 %v524, %v521
        %v570 = vpack.c.b16 %v525, %v522
        %v571 = vpack.c.b16 %v529, %v526
        %v572 = vpack.c.b16 %v530, %v527
        %v573 = vpack.c.b16 %v531, %v528
        %v574 = vpack.c.b16 %v535, %v532
        %v575 = vpack.c.b16 %v536, %v533
        %v576 = vpack.c.b16 %v537, %v534
        %v577 = vpack.c.b16 %v541, %v538
        %v578 = vpack.c.b16 %v542, %v539
        %v579 = vpack.c.b16 %v543, %v540
        %v580 = vpack.c.b16 %v547, %v544
        %v581 = vpack.c.b16 %v548, %v545
        %v582 = vpack.c.b16 %v549, %v546
        %v583 = vpack.c.b16 %v553, %v550
        %v584 = vpack.c.b16 %v554, %v551
        %v585 = vpack.c.b16 %v555, %v552
        %v586 = vpack.c.b16 %v559, %v556
        %v587 = vpack.c.b16 %v560, %v557
        %v588 = vpack.c.b16 %v561, %v558
        %v589 = vpack.c.b16 %v565, %v562
        %v590 = vpack.c.b16 %v566, %v563
        %v591 = vpack.c.b16 %v567, %v564
        %616 = vmatprep.subr.bf16.mxu0 %v569
        %617 = vmatpush1.bf16.msra.mxu0 %v568
        %618 = vmatprep.subr.bf16.mxu0 %v572
        %619 = vmatpush1.bf16.msra.mxu0 %v571
        %620 = vmatprep.subr.bf16.mxu0 %v575
        %621 = vmatpush1.bf16.msra.mxu0 %v574
        %622 = vmatprep.subr.bf16.mxu0 %v578
        %623 = vmatpush1.bf16.msra.mxu0 %v577
        %624 = vmatprep.subr.bf16.mxu0 %v581
        %625 = vmatpush1.bf16.msra.mxu0 %v580
        %626 = vmatprep.subr.bf16.mxu0 %v584
        %627 = vmatpush1.bf16.msra.mxu0 %v583
        %628 = vmatprep.subr.bf16.mxu0 %v587
        %629 = vmatpush1.bf16.msra.mxu0 %v586
        %630 = vmatprep.subr.bf16.mxu0 %v590
        %631 = vmatpush1.bf16.msra.mxu0 %v589
        %632 = vmatprep.subr.bf16.mxu0 0
        %633 = vmatpush1.bf16.msra.mxu0 0
        %634 = vmatprep.subr.bf16.mxu0 0
        %635 = vmatpush1.bf16.msra.mxu0 0
        %636 = vmatprep.subr.bf16.mxu0 0
        %637 = vmatpush1.bf16.msra.mxu0 0
        %638 = vmatprep.subr.bf16.mxu0 0
        %639 = vmatpush1.bf16.msra.mxu0 0
        %640 = vmatprep.subr.bf16.mxu0 0
        %641 = vmatpush1.bf16.msra.mxu0 0
        %642 = vmatprep.subr.bf16.mxu0 0
        %643 = vmatpush1.bf16.msra.mxu0 0
        %644 = vmatprep.subr.bf16.mxu0 0
        %645 = vmatpush1.bf16.msra.mxu0 0
        %646 = vmatprep.subr.bf16.mxu0 0
        %647 = vmatpush1.bf16.msra.mxu0 0
        %648 = vmatprep.mubr.bf16.mxu0 0
        %649 = vmatmul.mubr.bf16.gmra.mrb[0].mxu0 %v438
        %v650 = vpop.f32.mrb[0].mxu0
        %v651 = vadd.f32 %v476, %v650
        %v652 = vpop.f32.mrb[0].mxu0
        %v653 = vadd.f32 %v480, %v652
        %v654 = vpop.f32.mrb[0].mxu0
        %v655 = vadd.f32 %v476, %v654
        %v656 = vpop.f32.mrb[0].mxu0
        %v657 = vadd.f32 %v480, %v656
        %658 = vdwg.mxu0
        %659 = vmatprep.subr.bf16.mxu0 0
        %660 = vmatpush1.bf16.msra.mxu0 %v570
        %661 = vmatprep.subr.bf16.mxu0 0
        %662 = vmatpush1.bf16.msra.mxu0 %v573
        %663 = vmatprep.subr.bf16.mxu0 0
        %664 = vmatpush1.bf16.msra.mxu0 %v576
        %665 = vmatprep.subr.bf16.mxu0 0
        %666 = vmatpush1.bf16.msra.mxu0 %v579
        %667 = vmatprep.subr.bf16.mxu0 0
        %668 = vmatpush1.bf16.msra.mxu0 %v582
        %669 = vmatprep.subr.bf16.mxu0 0
        %670 = vmatpush1.bf16.msra.mxu0 %v585
        %671 = vmatprep.subr.bf16.mxu0 0
        %672 = vmatpush1.bf16.msra.mxu0 %v588
        %673 = vmatprep.subr.bf16.mxu0 0
        %674 = vmatpush1.bf16.msra.mxu0 %v591
        %675 = vmatprep.subr.bf16.mxu0 0
        %676 = vmatpush1.bf16.msra.mxu0 0
        %677 = vmatprep.subr.bf16.mxu0 0
        %678 = vmatpush1.bf16.msra.mxu0 0
        %679 = vmatprep.subr.bf16.mxu0 0
        %680 = vmatpush1.bf16.msra.mxu0 0
        %681 = vmatprep.subr.bf16.mxu0 0
        %682 = vmatpush1.bf16.msra.mxu0 0
        %683 = vmatprep.subr.bf16.mxu0 0
        %684 = vmatpush1.bf16.msra.mxu0 0
        %685 = vmatprep.subr.bf16.mxu0 0
        %686 = vmatpush1.bf16.msra.mxu0 0
        %687 = vmatprep.subr.bf16.mxu0 0
        %688 = vmatpush1.bf16.msra.mxu0 0
        %689 = vmatprep.subr.bf16.mxu0 0
        %690 = vmatpush1.bf16.msra.mxu0 0
        %691 = vmatprep.mubr.bf16.mxu0 0
        %692 = vmatmul.mubr.bf16.gmra.mrb[0].mxu0 %v438
        %v693 = vpop.f32.mrb[0].mxu0
        %v694 = vadd.f32 %v484, %v693
        %v695 = vpop.f32.mrb[0].mxu0
        %v696 = vpop.f32.mrb[0].mxu0
        %v697 = vadd.f32 %v484, %v696
        %v698 = vpop.f32.mrb[0].mxu0
        %699 = vdwg.mxu0
        %v700 = vpack.c.bf16 %v655, %v651
        %v701 = vpack.c.bf16 %v657, %v653
        %v702 = vpack.c.bf16 %v697, %v694
        %vm703 = vcmask 523264
        %v705 = vsel %vm703, %v700, 0
        %v708 = vsel %vm703, %v701, 0
        %710 = vmatprep.subr.bf16.mxu0 0
        %711 = vmatpush1.bf16.xpose.msra.mxu0 %v708
        %712 = vmatprep.subr.bf16.mxu0 0
        %713 = vmatpush1.bf16.xpose.msra.mxu0 0
        %714 = vmatprep.subr.bf16.mxu0 0
        %715 = vmatpush1.bf16.xpose.msra.mxu0 0
        %716 = vmatprep.subr.bf16.mxu0 0
        %717 = vmatpush1.bf16.xpose.msra.mxu0 0
        %718 = vmatprep.subr.bf16.mxu0 0
        %719 = vmatpush1.bf16.xpose.msra.mxu0 0
        %720 = vmatprep.subr.bf16.mxu0 0
        %721 = vmatpush1.bf16.xpose.msra.mxu0 0
        %722 = vmatprep.subr.bf16.mxu0 0
        %723 = vmatpush1.bf16.xpose.msra.mxu0 0
        %724 = vmatprep.subr.bf16.mxu0 0
        %725 = vmatpush1.bf16.xpose.msra.mxu0 0
        %726 = vmatprep.subr.bf16.mxu0 0
        %727 = vmatpush1.bf16.xpose.msra.mxu0 0
        %728 = vmatprep.subr.bf16.mxu0 0
        %729 = vmatpush1.bf16.xpose.msra.mxu0 0
        %730 = vmatprep.subr.bf16.mxu0 0
        %731 = vmatpush1.bf16.xpose.msra.mxu0 0
        %732 = vmatprep.subr.bf16.mxu0 0
        %733 = vmatpush1.bf16.xpose.msra.mxu0 0
        %734 = vmatprep.subr.bf16.mxu0 0
        %735 = vmatpush1.bf16.xpose.msra.mxu0 0
        %736 = vmatprep.subr.bf16.mxu0 0
        %737 = vmatpush1.bf16.xpose.msra.mxu0 0
        %738 = vmatprep.subr.bf16.mxu0 0
        %739 = vmatpush1.bf16.xpose.msra.mxu0 0
        %740 = vmatprep.subr.bf16.mxu0 0
        %741 = vmatpush1.bf16.xpose.msra.mxu0 0
        %742 = vmatprep.mubr.bf16.mxu0 0
        %743 = vmatmul.mubr.bf16.gmra.mrb[0].mxu0 %v705
        %v744 = vpop.f32.mrb[0].mxu0
        %v745 = vadd.f32 0.0, %v744
        %v746 = vpop.f32.mrb[0].mxu0
        %v747 = vpop.f32.mrb[0].mxu0
        %v748 = vadd.f32 0.0, %v747
        %v749 = vpop.f32.mrb[0].mxu0
        %750 = vdwg.mxu0
        %vm751 = vcmask 130048
        %v752 = vsel %vm751, %v745, -inf
        %753 = vmax.xlane.f32.xlu0 %v752
        %v754 = vpop.xlane.xlu0 %753
        %v755 = vsel %vm751, %v748, -inf
        %756 = vmax.xlane.f32.xlu0 %v755
        %v757 = vpop.xlane.xlu0 %756
        %v758 = vsub.f32 %v745, %v754
        %v759 = vsub.f32 %v748, %v757
        %v760 = vmul.f32 %v758, 1.442695
        %v761 = vpow.pop %v760
        %v762 = vmul.f32 %v759, 1.442695
        %v763 = vpow.pop %v762
        %v764 = vsel %vm751, %v761, 0.0
        %765 = vadd.xlane.f32.xlu0 %v764
        %v766 = vpop.xlane.xlu0 %765
        %v767 = vsel %vm751, %v763, 0.0
        %768 = vadd.xlane.f32.xlu0 %v767
        %v769 = vpop.xlane.xlu0 %768
        %v770 = vpack.c.bf16 %v763, %v761
        %v772 = vsel %vm751, %v770, 0
        %774 = vmatprep.subr.bf16.mxu0 0
        %775 = vmatpush1.bf16.msra.mxu0 %v702
        %776 = vmatprep.subr.bf16.mxu0 0
        %777 = vmatpush1.bf16.msra.mxu0 0
        %778 = vmatprep.subr.bf16.mxu0 0
        %779 = vmatpush1.bf16.msra.mxu0 0
        %780 = vmatprep.subr.bf16.mxu0 0
        %781 = vmatpush1.bf16.msra.mxu0 0
        %782 = vmatprep.subr.bf16.mxu0 0
        %783 = vmatpush1.bf16.msra.mxu0 0
        %784 = vmatprep.subr.bf16.mxu0 0
        %785 = vmatpush1.bf16.msra.mxu0 0
        %786 = vmatprep.subr.bf16.mxu0 0
        %787 = vmatpush1.bf16.msra.mxu0 0
        %788 = vmatprep.subr.bf16.mxu0 0
        %789 = vmatpush1.bf16.msra.mxu0 0
        %790 = vmatprep.subr.bf16.mxu0 0
        %791 = vmatpush1.bf16.msra.mxu0 0
        %792 = vmatprep.subr.bf16.mxu0 0
        %793 = vmatpush1.bf16.msra.mxu0 0
        %794 = vmatprep.subr.bf16.mxu0 0
        %795 = vmatpush1.bf16.msra.mxu0 0
        %796 = vmatprep.subr.bf16.mxu0 0
        %797 = vmatpush1.bf16.msra.mxu0 0
        %798 = vmatprep.subr.bf16.mxu0 0
        %799 = vmatpush1.bf16.msra.mxu0 0
        %800 = vmatprep.subr.bf16.mxu0 0
        %801 = vmatpush1.bf16.msra.mxu0 0
        %802 = vmatprep.subr.bf16.mxu0 0
        %803 = vmatpush1.bf16.msra.mxu0 0
        %804 = vmatprep.subr.bf16.mxu0 0
        %805 = vmatpush1.bf16.msra.mxu0 0
        %806 = vmatprep.mubr.bf16.mxu0 0
        %807 = vmatmul.mubr.bf16.gmra.mrb[0].mxu0 %v772
        %v808 = vpop.f32.mrb[0].mxu0
        %v809 = vadd.f32 0.0, %v808
        %v810 = vpop.f32.mrb[0].mxu0
        %v811 = vpop.f32.mrb[0].mxu0
        %v812 = vadd.f32 0.0, %v811
        %v813 = vpop.f32.mrb[0].mxu0
        %814 = vdwg.mxu0
        %v815 = vrcp.pop %v766
        %v816 = vrcp.pop %v769
        %v817 = vmul.f32 %v809, %v815
        %v818 = vmul.f32 %v812, %v816
        %v819 = vpack.c.bf16 %v818, %v817
        %820 = vst.msk [vmem:[#allocation2] sm:$0xff] %vm703, %v819
        %822 = vrot.lane.b32.xlu0 %v700, 64
        %v823 = vpop.permute.xlu0 %822
        %825 = vrot.lane.b32.xlu0 %v701, 64
        %v826 = vpop.permute.xlu0 %825
        %v828 = vsel %vm703, %v823, 0
        %v831 = vsel %vm703, %v826, 0
        %833 = vmatprep.subr.bf16.mxu0 0
        %834 = vmatpush1.bf16.xpose.msra.mxu0 %v831
        %835 = vmatprep.subr.bf16.mxu0 0
        %836 = vmatpush1.bf16.xpose.msra.mxu0 0
        %837 = vmatprep.subr.bf16.mxu0 0
        %838 = vmatpush1.bf16.xpose.msra.mxu0 0
        %839 = vmatprep.subr.bf16.mxu0 0
        %840 = vmatpush1.bf16.xpose.msra.mxu0 0
        %841 = vmatprep.subr.bf16.mxu0 0
        %842 = vmatpush1.bf16.xpose.msra.mxu0 0
        %843 = vmatprep.subr.bf16.mxu0 0
        %844 = vmatpush1.bf16.xpose.msra.mxu0 0
        %845 = vmatprep.subr.bf16.mxu0 0
        %846 = vmatpush1.bf16.xpose.msra.mxu0 0
        %847 = vmatprep.subr.bf16.mxu0 0
        %848 = vmatpush1.bf16.xpose.msra.mxu0 0
        %849 = vmatprep.subr.bf16.mxu0 0
        %850 = vmatpush1.bf16.xpose.msra.mxu0 0
        %851 = vmatprep.subr.bf16.mxu0 0
        %852 = vmatpush1.bf16.xpose.msra.mxu0 0
        %853 = vmatprep.subr.bf16.mxu0 0
        %854 = vmatpush1.bf16.xpose.msra.mxu0 0
        %855 = vmatprep.subr.bf16.mxu0 0
        %856 = vmatpush1.bf16.xpose.msra.mxu0 0
        %857 = vmatprep.subr.bf16.mxu0 0
        %858 = vmatpush1.bf16.xpose.msra.mxu0 0
        %859 = vmatprep.subr.bf16.mxu0 0
        %860 = vmatpush1.bf16.xpose.msra.mxu0 0
        %861 = vmatprep.subr.bf16.mxu0 0
        %862 = vmatpush1.bf16.xpose.msra.mxu0 0
        %863 = vmatprep.subr.bf16.mxu0 0
        %864 = vmatpush1.bf16.xpose.msra.mxu0 0
        %865 = vmatprep.mubr.bf16.mxu0 0
        %866 = vmatmul.mubr.bf16.gmra.mrb[0].mxu0 %v828
        %v867 = vpop.f32.mrb[0].mxu0
        %v868 = vadd.f32 0.0, %v867
        %v869 = vpop.f32.mrb[0].mxu0
        %v870 = vpop.f32.mrb[0].mxu0
        %v871 = vadd.f32 0.0, %v870
        %v872 = vpop.f32.mrb[0].mxu0
        %873 = vdwg.mxu0
        %v874 = vsel %vm751, %v868, -inf
        %875 = vmax.xlane.f32.xlu0 %v874
        %v876 = vpop.xlane.xlu0 %875
        %v877 = vsel %vm751, %v871, -inf
        %878 = vmax.xlane.f32.xlu0 %v877
        %v879 = vpop.xlane.xlu0 %878
        %v880 = vsub.f32 %v868, %v876
        %v881 = vsub.f32 %v871, %v879
        %v882 = vmul.f32 %v880, 1.442695
        %v883 = vpow.pop %v882
        %v884 = vmul.f32 %v881, 1.442695
        %v885 = vpow.pop %v884
        %v886 = vsel %vm751, %v883, 0.0
        %887 = vadd.xlane.f32.xlu0 %v886
        %v888 = vpop.xlane.xlu0 %887
        %v889 = vsel %vm751, %v885, 0.0
        %890 = vadd.xlane.f32.xlu0 %v889
        %v891 = vpop.xlane.xlu0 %890
        %v892 = vpack.c.bf16 %v885, %v883
        %894 = vrot.lane.b32.xlu0 %v702, 64
        %v895 = vpop.permute.xlu0 %894
        %v898 = vsel %vm751, %v892, 0
        %900 = vmatprep.subr.bf16.mxu0 0
        %901 = vmatpush1.bf16.msra.mxu0 %v895
        %902 = vmatprep.subr.bf16.mxu0 0
        %903 = vmatpush1.bf16.msra.mxu0 0
        %904 = vmatprep.subr.bf16.mxu0 0
        %905 = vmatpush1.bf16.msra.mxu0 0
        %906 = vmatprep.subr.bf16.mxu0 0
        %907 = vmatpush1.bf16.msra.mxu0 0
        %908 = vmatprep.subr.bf16.mxu0 0
        %909 = vmatpush1.bf16.msra.mxu0 0
        %910 = vmatprep.subr.bf16.mxu0 0
        %911 = vmatpush1.bf16.msra.mxu0 0
        %912 = vmatprep.subr.bf16.mxu0 0
        %913 = vmatpush1.bf16.msra.mxu0 0
        %914 = vmatprep.subr.bf16.mxu0 0
        %915 = vmatpush1.bf16.msra.mxu0 0
        %916 = vmatprep.subr.bf16.mxu0 0
        %917 = vmatpush1.bf16.msra.mxu0 0
        %918 = vmatprep.subr.bf16.mxu0 0
        %919 = vmatpush1.bf16.msra.mxu0 0
        %920 = vmatprep.subr.bf16.mxu0 0
        %921 = vmatpush1.bf16.msra.mxu0 0
        %922 = vmatprep.subr.bf16.mxu0 0
        %923 = vmatpush1.bf16.msra.mxu0 0
        %924 = vmatprep.subr.bf16.mxu0 0
        %925 = vmatpush1.bf16.msra.mxu0 0
        %926 = vmatprep.subr.bf16.mxu0 0
        %927 = vmatpush1.bf16.msra.mxu0 0
        %928 = vmatprep.subr.bf16.mxu0 0
        %929 = vmatpush1.bf16.msra.mxu0 0
        %930 = vmatprep.subr.bf16.mxu0 0
        %931 = vmatpush1.bf16.msra.mxu0 0
        %932 = vmatprep.mubr.bf16.mxu0 0
        %933 = vmatmul.mubr.bf16.gmra.mrb[0].mxu0 %v898
        %v934 = vpop.f32.mrb[0].mxu0
        %v935 = vadd.f32 0.0, %v934
        %v936 = vpop.f32.mrb[0].mxu0
        %v937 = vpop.f32.mrb[0].mxu0
        %v938 = vadd.f32 0.0, %v937
        %v939 = vpop.f32.mrb[0].mxu0
        %940 = vdwg.mxu0
        %v941 = vrcp.pop %v888
        %v942 = vrcp.pop %v891
        %v943 = vmul.f32 %v935, %v941
        %v944 = vmul.f32 %v938, %v942
        %v945 = vpack.c.bf16 %v944, %v943
        %947 = vrot.lane.b32.xlu0 %v945, 64
        %v948 = vpop.permute.xlu0 %947
        %vm950 = vcmask 1048064
        %951 = vst.msk [vmem:[#allocation2] sm:$0xff] %vm950, %v948
        %v952 = vld [vmem:[#allocation2] sm:$0xff]
        %v953 = vld [vmem:[#allocation8] sm:$0xf]
        %v954 = vld [vmem:[#allocation8 + $0x4] sm:$0xf]
        %v955 = vld [vmem:[#allocation8 + $0x8] sm:$0xf]
        %v956 = vld [vmem:[#allocation8 + $0xc] sm:$0xf]
        %v957 = vld [vmem:[#allocation8 + $0x10] sm:$0xf]
        %v958 = vld [vmem:[#allocation8 + $0x14] sm:$0xf]
        %v959 = vld [vmem:[#allocation8 + $0x18] sm:$0xf]
        %v960 = vld [vmem:[#allocation8 + $0x1c] sm:$0xf]
        %v961 = vld [vmem:[#allocation8 + $0x20] sm:$0xf]
        %v962 = vld [vmem:[#allocation8 + $0x24] sm:$0xf]
        %v963 = vld [vmem:[#allocation8 + $0x28] sm:$0xf]
        %v964 = vld [vmem:[#allocation8 + $0x2c] sm:$0xf]
        %v965 = vld [vmem:[#allocation8 + $0x30] sm:$0xf]
        %v966 = vld [vmem:[#allocation8 + $0x34] sm:$0xf]
        %v967 = vld [vmem:[#allocation8 + $0x38] sm:$0xf]
        %v968 = vld [vmem:[#allocation8 + $0x3c] sm:$0xf]
        %v985 = vunpack.c.l.b16 %v953
        %v986 = vunpack.c.l.b16 %v954
        %v987 = vunpack.c.l.b16 %v955
        %v988 = vunpack.c.l.b16 %v956
        %v989 = vunpack.c.l.b16 %v957
        %v990 = vunpack.c.l.b16 %v958
        %v991 = vunpack.c.l.b16 %v959
        %v992 = vunpack.c.l.b16 %v960
        %v993 = vunpack.c.l.b16 %v961
        %v994 = vunpack.c.l.b16 %v962
        %v995 = vunpack.c.l.b16 %v963
        %v996 = vunpack.c.l.b16 %v964
        %v997 = vunpack.c.l.b16 %v965
        %v998 = vunpack.c.l.b16 %v966
        %v999 = vunpack.c.l.b16 %v967
        %v1000 = vunpack.c.l.b16 %v968
        %v1001 = vpack.c.b16 %v986, %v985
        %v1002 = vpack.c.b16 %v988, %v987
        %v1003 = vpack.c.b16 %v990, %v989
        %v1004 = vpack.c.b16 %v992, %v991
        %v1005 = vpack.c.b16 %v994, %v993
        %v1006 = vpack.c.b16 %v996, %v995
        %v1007 = vpack.c.b16 %v998, %v997
        %v1008 = vpack.c.b16 %v1000, %v999
        %1017 = vmatprep.subr.bf16.mxu0 0
        %1018 = vmatpush1.bf16.msra.mxu0 %v1001
        %1019 = vmatprep.subr.bf16.mxu0 0
        %1020 = vmatpush1.bf16.msra.mxu0 %v1002
        %1021 = vmatprep.subr.bf16.mxu0 0
        %1022 = vmatpush1.bf16.msra.mxu0 %v1003
        %1023 = vmatprep.subr.bf16.mxu0 0
        %1024 = vmatpush1.bf16.msra.mxu0 %v1004
        %1025 = vmatprep.subr.bf16.mxu0 0
        %1026 = vmatpush1.bf16.msra.mxu0 %v1005
        %1027 = vmatprep.subr.bf16.mxu0 0
        %1028 = vmatpush1.bf16.msra.mxu0 %v1006
        %1029 = vmatprep.subr.bf16.mxu0 0
        %1030 = vmatpush1.bf16.msra.mxu0 %v1007
        %1031 = vmatprep.subr.bf16.mxu0 0
        %1032 = vmatpush1.bf16.msra.mxu0 %v1008
        %1033 = vmatprep.subr.bf16.mxu0 0
        %1034 = vmatpush1.bf16.msra.mxu0 0
        %1035 = vmatprep.subr.bf16.mxu0 0
        %1036 = vmatpush1.bf16.msra.mxu0 0
        %1037 = vmatprep.subr.bf16.mxu0 0
        %1038 = vmatpush1.bf16.msra.mxu0 0
        %1039 = vmatprep.subr.bf16.mxu0 0
        %1040 = vmatpush1.bf16.msra.mxu0 0
        %1041 = vmatprep.subr.bf16.mxu0 0
        %1042 = vmatpush1.bf16.msra.mxu0 0
        %1043 = vmatprep.subr.bf16.mxu0 0
        %1044 = vmatpush1.bf16.msra.mxu0 0
        %1045 = vmatprep.subr.bf16.mxu0 0
        %1046 = vmatpush1.bf16.msra.mxu0 0
        %1047 = vmatprep.subr.bf16.mxu0 0
        %1048 = vmatpush1.bf16.msra.mxu0 0
        %1049 = vmatprep.mubr.bf16.mxu0 0
        %1050 = vmatmul.mubr.bf16.gmra.mrb[0].mxu0 %v952
        %v1051 = vpop.f32.mrb[0].mxu0
        %v1052 = vadd.f32 0.0, %v1051
        %v1053 = vpop.f32.mrb[0].mxu0
        %v1054 = vpop.f32.mrb[0].mxu0
        %v1055 = vadd.f32 0.0, %v1054
        %v1056 = vpop.f32.mrb[0].mxu0
        %1057 = vdwg.mxu0
        %v1058 = vadd.f32 %v409, %v1052
        %v1059 = vadd.f32 %v410, %v1055
        %v1060 = vld [vmem:[%s4] sm:$0x1]
        %v1062 = vlaneseq
        %v1063 = vshrl.u32 %v1062, 7
        %v1064 = vsub.s32 0, %v1063
        %v1065 = vrot.slane %v1060, %v1064
        %v1067 = vadd.f32 %v1058, %v1065
        %v1068 = vadd.f32 %v1059, %v1065
        %1069 = vadd.xlane.f32.xlu0 %v1067
        %v1070 = vpop.xlane.xlu0 %1069
        %1071 = vadd.xlane.f32.xlu0 %v1068
        %v1072 = vpop.xlane.xlu0 %1071
        %v1073 = vmul.f32 %v1070, %v415
        %v1074 = vmul.f32 %v1072, %v415
        %v1075 = vmul.f32 %v1067, %v1067
        %v1076 = vmul.f32 %v1068, %v1068
        %1077 = vadd.xlane.f32.xlu0 %v1075
        %v1078 = vpop.xlane.xlu0 %1077
        %1079 = vadd.xlane.f32.xlu0 %v1076
        %v1080 = vpop.xlane.xlu0 %1079
        %v1081 = vmul.f32 %v1078, %v415
        %v1082 = vmul.f32 %v1080, %v415
        %v1083 = vmul.f32 %v1073, %v1073
        %v1084 = vmul.f32 %v1074, %v1074
        %v1085 = vsub.f32 %v1081, %v1083
        %v1086 = vsub.f32 %v1082, %v1084
        %v1087 = vsub.f32 %v1067, %v1073
        %v1088 = vsub.f32 %v1068, %v1074
        %v1089 = vadd.f32 %v1085, 1e-05
        %v1090 = vadd.f32 %v1086, 1e-05
        %v1091 = vrsqrt.pop %v1089
        %v1092 = vrsqrt.pop %v1090
        %v1093 = vmul.f32 %v1087, %v1091
        %v1094 = vmul.f32 %v1088, %v1092
        %v1095 = vpack.c.bf16 %v1094, %v1093
        %v1096 = vld [vmem:[#allocation9] sm:$0xff]
        %v1097 = vld [vmem:[#allocation9 + $0x8] sm:$0xff]
        %v1098 = vld [vmem:[#allocation9 + $0x10] sm:$0xff]
        %v1099 = vld [vmem:[#allocation9 + $0x18] sm:$0xff]
        %v1100 = vld [vmem:[#allocation9 + $0x20] sm:$0xff]
        %v1101 = vld [vmem:[#allocation9 + $0x28] sm:$0xff]
        %v1102 = vld [vmem:[#allocation9 + $0x30] sm:$0xff]
        %v1103 = vld [vmem:[#allocation9 + $0x38] sm:$0xff]
        %v1104 = vld [vmem:[#allocation9 + $0x40] sm:$0xff]
        %v1105 = vld [vmem:[#allocation9 + $0x48] sm:$0xff]
        %v1106 = vld [vmem:[#allocation9 + $0x50] sm:$0xff]
        %v1107 = vld [vmem:[#allocation9 + $0x58] sm:$0xff]
        %v1108 = vld [vmem:[#allocation9 + $0x60] sm:$0xff]
        %v1109 = vld [vmem:[#allocation9 + $0x68] sm:$0xff]
        %v1110 = vld [vmem:[#allocation9 + $0x70] sm:$0xff]
        %v1111 = vld [vmem:[#allocation9 + $0x78] sm:$0xff]
        %v1112 = vld [vmem:[#allocation9 + $0x80] sm:$0xff]
        %v1113 = vld [vmem:[#allocation9 + $0x88] sm:$0xff]
        %v1114 = vld [vmem:[#allocation9 + $0x90] sm:$0xff]
        %v1115 = vld [vmem:[#allocation9 + $0x98] sm:$0xff]
        %v1116 = vld [vmem:[#allocation9 + $0xa0] sm:$0xff]
        %v1117 = vld [vmem:[#allocation9 + $0xa8] sm:$0xff]
        %v1118 = vld [vmem:[#allocation9 + $0xb0] sm:$0xff]
        %v1119 = vld [vmem:[#allocation9 + $0xb8] sm:$0xff]
        %v1120 = vld [vmem:[#allocation9 + $0xc0] sm:$0xff]
        %v1121 = vld [vmem:[#allocation9 + $0xc8] sm:$0xff]
        %v1122 = vld [vmem:[#allocation9 + $0xd0] sm:$0xff]
        %v1123 = vld [vmem:[#allocation9 + $0xd8] sm:$0xff]
        %v1124 = vld [vmem:[#allocation9 + $0xe0] sm:$0xff]
        %v1125 = vld [vmem:[#allocation9 + $0xe8] sm:$0xff]
        %v1126 = vld [vmem:[#allocation9 + $0xf0] sm:$0xff]
        %v1127 = vld [vmem:[#allocation9 + $0xf8] sm:$0xff]
        %v1128 = vld [vmem:[%s6] sm:$0xf]
        %v1130 = vlaneseq
        %v1131 = vshrl.u32 %v1130, 7
        %v1132 = vsub.s32 0, %v1131
        %v1133 = vrot.slane %v1128, %v1132
        %v1134 = vlaneseq
        %v1135 = vshrl.u32 %v1134, 7
        %v1136 = vsub.s32 1, %v1135
        %v1137 = vrot.slane %v1128, %v1136
        %v1138 = vlaneseq
        %v1139 = vshrl.u32 %v1138, 7
        %v1140 = vsub.s32 2, %v1139
        %v1141 = vrot.slane %v1128, %v1140
        %v1142 = vlaneseq
        %v1143 = vshrl.u32 %v1142, 7
        %v1144 = vsub.s32 3, %v1143
        %v1145 = vrot.slane %v1128, %v1144
        %v1182 = vunpack.c.l.b16 %v1096
        %v1183 = vunpack.c.h.b16 %v1096
        %v1184 = vunpack.c.l.b16 %v1097
        %v1185 = vunpack.c.h.b16 %v1097
        %v1186 = vunpack.c.l.b16 %v1098
        %v1187 = vunpack.c.h.b16 %v1098
        %v1188 = vunpack.c.l.b16 %v1099
        %v1189 = vunpack.c.h.b16 %v1099
        %v1190 = vunpack.c.l.b16 %v1100
        %v1191 = vunpack.c.h.b16 %v1100
        %v1192 = vunpack.c.l.b16 %v1101
        %v1193 = vunpack.c.h.b16 %v1101
        %v1194 = vunpack.c.l.b16 %v1102
        %v1195 = vunpack.c.h.b16 %v1102
        %v1196 = vunpack.c.l.b16 %v1103
        %v1197 = vunpack.c.h.b16 %v1103
        %v1198 = vunpack.c.l.b16 %v1104
        %v1199 = vunpack.c.h.b16 %v1104
        %v1200 = vunpack.c.l.b16 %v1105
        %v1201 = vunpack.c.h.b16 %v1105
        %v1202 = vunpack.c.l.b16 %v1106
        %v1203 = vunpack.c.h.b16 %v1106
        %v1204 = vunpack.c.l.b16 %v1107
        %v1205 = vunpack.c.h.b16 %v1107
        %v1206 = vunpack.c.l.b16 %v1108
        %v1207 = vunpack.c.h.b16 %v1108
        %v1208 = vunpack.c.l.b16 %v1109
        %v1209 = vunpack.c.h.b16 %v1109
        %v1210 = vunpack.c.l.b16 %v1110
        %v1211 = vunpack.c.h.b16 %v1110
        %v1212 = vunpack.c.l.b16 %v1111
        %v1213 = vunpack.c.h.b16 %v1111
        %v1214 = vunpack.c.l.b16 %v1112
        %v1215 = vunpack.c.h.b16 %v1112
        %v1216 = vunpack.c.l.b16 %v1113
        %v1217 = vunpack.c.h.b16 %v1113
        %v1218 = vunpack.c.l.b16 %v1114
        %v1219 = vunpack.c.h.b16 %v1114
        %v1220 = vunpack.c.l.b16 %v1115
        %v1221 = vunpack.c.h.b16 %v1115
        %v1222 = vunpack.c.l.b16 %v1116
        %v1223 = vunpack.c.h.b16 %v1116
        %v1224 = vunpack.c.l.b16 %v1117
        %v1225 = vunpack.c.h.b16 %v1117
        %v1226 = vunpack.c.l.b16 %v1118
        %v1227 = vunpack.c.h.b16 %v1118
        %v1228 = vunpack.c.l.b16 %v1119
        %v1229 = vunpack.c.h.b16 %v1119
        %v1230 = vunpack.c.l.b16 %v1120
        %v1231 = vunpack.c.h.b16 %v1120
        %v1232 = vunpack.c.l.b16 %v1121
        %v1233 = vunpack.c.h.b16 %v1121
        %v1234 = vunpack.c.l.b16 %v1122
        %v1235 = vunpack.c.h.b16 %v1122
        %v1236 = vunpack.c.l.b16 %v1123
        %v1237 = vunpack.c.h.b16 %v1123
        %v1238 = vunpack.c.l.b16 %v1124
        %v1239 = vunpack.c.h.b16 %v1124
        %v1240 = vunpack.c.l.b16 %v1125
        %v1241 = vunpack.c.h.b16 %v1125
        %v1242 = vunpack.c.l.b16 %v1126
        %v1243 = vunpack.c.h.b16 %v1126
        %v1244 = vunpack.c.l.b16 %v1127
        %v1245 = vunpack.c.h.b16 %v1127
        %v1246 = vpack.c.b16 %v1186, %v1182
        %v1247 = vpack.c.b16 %v1187, %v1183
        %v1248 = vpack.c.b16 %v1188, %v1184
        %v1249 = vpack.c.b16 %v1189, %v1185
        %v1250 = vpack.c.b16 %v1194, %v1190
        %v1251 = vpack.c.b16 %v1195, %v1191
        %v1252 = vpack.c.b16 %v1196, %v1192
        %v1253 = vpack.c.b16 %v1197, %v1193
        %v1254 = vpack.c.b16 %v1202, %v1198
        %v1255 = vpack.c.b16 %v1203, %v1199
        %v1256 = vpack.c.b16 %v1204, %v1200
        %v1257 = vpack.c.b16 %v1205, %v1201
        %v1258 = vpack.c.b16 %v1210, %v1206
        %v1259 = vpack.c.b16 %v1211, %v1207
        %v1260 = vpack.c.b16 %v1212, %v1208
        %v1261 = vpack.c.b16 %v1213, %v1209
        %v1262 = vpack.c.b16 %v1218, %v1214
        %v1263 = vpack.c.b16 %v1219, %v1215
        %v1264 = vpack.c.b16 %v1220, %v1216
        %v1265 = vpack.c.b16 %v1221, %v1217
        %v1266 = vpack.c.b16 %v1226, %v1222
        %v1267 = vpack.c.b16 %v1227, %v1223
        %v1268 = vpack.c.b16 %v1228, %v1224
        %v1269 = vpack.c.b16 %v1229, %v1225
        %v1270 = vpack.c.b16 %v1234, %v1230
        %v1271 = vpack.c.b16 %v1235, %v1231
        %v1272 = vpack.c.b16 %v1236, %v1232
        %v1273 = vpack.c.b16 %v1237, %v1233
        %v1274 = vpack.c.b16 %v1242, %v1238
        %v1275 = vpack.c.b16 %v1243, %v1239
        %v1276 = vpack.c.b16 %v1244, %v1240
        %v1277 = vpack.c.b16 %v1245, %v1241
        %1310 = vmatprep.subr.bf16.mxu0 %v1247
        %1311 = vmatpush1.bf16.msra.mxu0 %v1246
        %1312 = vmatprep.subr.bf16.mxu0 %v1251
        %1313 = vmatpush1.bf16.msra.mxu0 %v1250
        %1314 = vmatprep.subr.bf16.mxu0 %v1255
        %1315 = vmatpush1.bf16.msra.mxu0 %v1254
        %1316 = vmatprep.subr.bf16.mxu0 %v1259
        %1317 = vmatpush1.bf16.msra.mxu0 %v1258
        %1318 = vmatprep.subr.bf16.mxu0 %v1263
        %1319 = vmatpush1.bf16.msra.mxu0 %v1262
        %1320 = vmatprep.subr.bf16.mxu0 %v1267
        %1321 = vmatpush1.bf16.msra.mxu0 %v1266
        %1322 = vmatprep.subr.bf16.mxu0 %v1271
        %1323 = vmatpush1.bf16.msra.mxu0 %v1270
        %1324 = vmatprep.subr.bf16.mxu0 %v1275
        %1325 = vmatpush1.bf16.msra.mxu0 %v1274
        %1326 = vmatprep.subr.bf16.mxu0 0
        %1327 = vmatpush1.bf16.msra.mxu0 0
        %1328 = vmatprep.subr.bf16.mxu0 0
        %1329 = vmatpush1.bf16.msra.mxu0 0
        %1330 = vmatprep.subr.bf16.mxu0 0
        %1331 = vmatpush1.bf16.msra.mxu0 0
        %1332 = vmatprep.subr.bf16.mxu0 0
        %1333 = vmatpush1.bf16.msra.mxu0 0
        %1334 = vmatprep.subr.bf16.mxu0 0
        %1335 = vmatpush1.bf16.msra.mxu0 0
        %1336 = vmatprep.subr.bf16.mxu0 0
        %1337 = vmatpush1.bf16.msra.mxu0 0
        %1338 = vmatprep.subr.bf16.mxu0 0
        %1339 = vmatpush1.bf16.msra.mxu0 0
        %1340 = vmatprep.subr.bf16.mxu0 0
        %1341 = vmatpush1.bf16.msra.mxu0 0
        %1342 = vmatprep.mubr.bf16.mxu0 0
        %1343 = vmatmul.mubr.bf16.gmra.mrb[0].mxu0 %v1095
        %v1344 = vpop.f32.mrb[0].mxu0
        %v1345 = vadd.f32 %v1133, %v1344
        %v1346 = vpop.f32.mrb[0].mxu0
        %v1347 = vadd.f32 %v1137, %v1346
        %v1348 = vpop.f32.mrb[0].mxu0
        %v1349 = vadd.f32 %v1133, %v1348
        %v1350 = vpop.f32.mrb[0].mxu0
        %v1351 = vadd.f32 %v1137, %v1350
        %1352 = vdwg.mxu0
        %1353 = vmatprep.subr.bf16.mxu0 %v1249
        %1354 = vmatpush1.bf16.msra.mxu0 %v1248
        %1355 = vmatprep.subr.bf16.mxu0 %v1253
        %1356 = vmatpush1.bf16.msra.mxu0 %v1252
        %1357 = vmatprep.subr.bf16.mxu0 %v1257
        %1358 = vmatpush1.bf16.msra.mxu0 %v1256
        %1359 = vmatprep.subr.bf16.mxu0 %v1261
        %1360 = vmatpush1.bf16.msra.mxu0 %v1260
        %1361 = vmatprep.subr.bf16.mxu0 %v1265
        %1362 = vmatpush1.bf16.msra.mxu0 %v1264
        %1363 = vmatprep.subr.bf16.mxu0 %v1269
        %1364 = vmatpush1.bf16.msra.mxu0 %v1268
        %1365 = vmatprep.subr.bf16.mxu0 %v1273
        %1366 = vmatpush1.bf16.msra.mxu0 %v1272
        %1367 = vmatprep.subr.bf16.mxu0 %v1277
        %1368 = vmatpush1.bf16.msra.mxu0 %v1276
        %1369 = vmatprep.subr.bf16.mxu0 0
        %1370 = vmatpush1.bf16.msra.mxu0 0
        %1371 = vmatprep.subr.bf16.mxu0 0
        %1372 = vmatpush1.bf16.msra.mxu0 0
        %1373 = vmatprep.subr.bf16.mxu0 0
        %1374 = vmatpush1.bf16.msra.mxu0 0
        %1375 = vmatprep.subr.bf16.mxu0 0
        %1376 = vmatpush1.bf16.msra.mxu0 0
        %1377 = vmatprep.subr.bf16.mxu0 0
        %1378 = vmatpush1.bf16.msra.mxu0 0
        %1379 = vmatprep.subr.bf16.mxu0 0
        %1380 = vmatpush1.bf16.msra.mxu0 0
        %1381 = vmatprep.subr.bf16.mxu0 0
        %1382 = vmatpush1.bf16.msra.mxu0 0
        %1383 = vmatprep.subr.bf16.mxu0 0
        %1384 = vmatpush1.bf16.msra.mxu0 0
        %1385 = vmatprep.mubr.bf16.mxu0 0
        %1386 = vmatmul.mubr.bf16.gmra.mrb[0].mxu0 %v1095
        %v1387 = vpop.f32.mrb[0].mxu0
        %v1388 = vadd.f32 %v1141, %v1387
        %v1389 = vpop.f32.mrb[0].mxu0
        %v1390 = vadd.f32 %v1145, %v1389
        %v1391 = vpop.f32.mrb[0].mxu0
        %v1392 = vadd.f32 %v1141, %v1391
        %v1393 = vpop.f32.mrb[0].mxu0
        %v1394 = vadd.f32 %v1145, %v1393
        %1395 = vdwg.mxu0
        %v1396 = vmul.f32 %v1345, 1.702
        %v1397 = vmul.f32 %v1347, 1.702
        %v1398 = vmul.f32 %v1388, 1.702
        %v1399 = vmul.f32 %v1390, 1.702
        %v1400 = vmul.f32 %v1349, 1.702
        %v1401 = vmul.f32 %v1351, 1.702
        %v1402 = vmul.f32 %v1392, 1.702
        %v1403 = vmul.f32 %v1394, 1.702
        %v1404 = vxor.u32 %v1396, 2147483648
        %v1405 = vxor.u32 %v1397, 2147483648
        %v1406 = vxor.u32 %v1398, 2147483648
        %v1407 = vxor.u32 %v1399, 2147483648
        %v1408 = vxor.u32 %v1400, 2147483648
        %v1409 = vxor.u32 %v1401, 2147483648
        %v1410 = vxor.u32 %v1402, 2147483648
        %v1411 = vxor.u32 %v1403, 2147483648
        %v1412 = vmul.f32 %v1404, 1.442695
        %v1413 = vpow.pop %v1412
        %v1414 = vmul.f32 %v1405, 1.442695
        %v1415 = vpow.pop %v1414
        %v1416 = vmul.f32 %v1406, 1.442695
        %v1417 = vpow.pop %v1416
        %v1418 = vmul.f32 %v1407, 1.442695
        %v1419 = vpow.pop %v1418
        %v1420 = vmul.f32 %v1408, 1.442695
        %v1421 = vpow.pop %v1420
        %v1422 = vmul.f32 %v1409, 1.442695
        %v1423 = vpow.pop %v1422
        %v1424 = vmul.f32 %v1410, 1.442695
        %v1425 = vpow.pop %v1424
        %v1426 = vmul.f32 %v1411, 1.442695
        %v1427 = vpow.pop %v1426
        %v1428 = vadd.f32 %v1413, 1.0
        %v1429 = vadd.f32 %v1415, 1.0
        %v1430 = vadd.f32 %v1417, 1.0
        %v1431 = vadd.f32 %v1419, 1.0
        %v1432 = vadd.f32 %v1421, 1.0
        %v1433 = vadd.f32 %v1423, 1.0
        %v1434 = vadd.f32 %v1425, 1.0
        %v1435 = vadd.f32 %v1427, 1.0
        %v1436 = vrcp.pop %v1428
        %v1437 = vmul.f32 1.0, %v1436
        %v1438 = vrcp.pop %v1429
        %v1439 = vmul.f32 1.0, %v1438
        %v1440 = vrcp.pop %v1430
        %v1441 = vmul.f32 1.0, %v1440
        %v1442 = vrcp.pop %v1431
        %v1443 = vmul.f32 1.0, %v1442
        %v1444 = vrcp.pop %v1432
        %v1445 = vmul.f32 1.0, %v1444
        %v1446 = vrcp.pop %v1433
        %v1447 = vmul.f32 1.0, %v1446
        %v1448 = vrcp.pop %v1434
        %v1449 = vmul.f32 1.0, %v1448
        %v1450 = vrcp.pop %v1435
        %v1451 = vmul.f32 1.0, %v1450
        %v1452 = vmul.f32 %v1345, %v1437
        %v1453 = vmul.f32 %v1347, %v1439
        %v1454 = vmul.f32 %v1388, %v1441
        %v1455 = vmul.f32 %v1390, %v1443
        %v1456 = vmul.f32 %v1349, %v1445
        %v1457 = vmul.f32 %v1351, %v1447
        %v1458 = vmul.f32 %v1392, %v1449
        %v1459 = vmul.f32 %v1394, %v1451
        %v1460 = vpack.c.bf16 %v1456, %v1452
        %v1461 = vpack.c.bf16 %v1457, %v1453
        %v1462 = vpack.c.bf16 %v1458, %v1454
        %v1463 = vpack.c.bf16 %v1459, %v1455
        %v1464 = vld [vmem:[#allocation11] sm:$0xf]
        %v1465 = vld [vmem:[#allocation11 + $0x4] sm:$0xf]
        %v1466 = vld [vmem:[#allocation11 + $0x8] sm:$0xf]
        %v1467 = vld [vmem:[#allocation11 + $0xc] sm:$0xf]
        %v1468 = vld [vmem:[#allocation11 + $0x10] sm:$0xf]
        %v1469 = vld [vmem:[#allocation11 + $0x14] sm:$0xf]
        %v1470 = vld [vmem:[#allocation11 + $0x18] sm:$0xf]
        %v1471 = vld [vmem:[#allocation11 + $0x1c] sm:$0xf]
        %v1472 = vld [vmem:[#allocation11 + $0x20] sm:$0xf]
        %v1473 = vld [vmem:[#allocation11 + $0x24] sm:$0xf]
        %v1474 = vld [vmem:[#allocation11 + $0x28] sm:$0xf]
        %v1475 = vld [vmem:[#allocation11 + $0x2c] sm:$0xf]
        %v1476 = vld [vmem:[#allocation11 + $0x30] sm:$0xf]
        %v1477 = vld [vmem:[#allocation11 + $0x34] sm:$0xf]
        %v1478 = vld [vmem:[#allocation11 + $0x38] sm:$0xf]
        %v1479 = vld [vmem:[#allocation11 + $0x3c] sm:$0xf]
        %v1480 = vld [vmem:[#allocation11 + $0x40] sm:$0xf]
        %v1481 = vld [vmem:[#allocation11 + $0x44] sm:$0xf]
        %v1482 = vld [vmem:[#allocation11 + $0x48] sm:$0xf]
        %v1483 = vld [vmem:[#allocation11 + $0x4c] sm:$0xf]
        %v1484 = vld [vmem:[#allocation11 + $0x50] sm:$0xf]
        %v1485 = vld [vmem:[#allocation11 + $0x54] sm:$0xf]
        %v1486 = vld [vmem:[#allocation11 + $0x58] sm:$0xf]
        %v1487 = vld [vmem:[#allocation11 + $0x5c] sm:$0xf]
        %v1488 = vld [vmem:[#allocation11 + $0x60] sm:$0xf]
        %v1489 = vld [vmem:[#allocation11 + $0x64] sm:$0xf]
        %v1490 = vld [vmem:[#allocation11 + $0x68] sm:$0xf]
        %v1491 = vld [vmem:[#allocation11 + $0x6c] sm:$0xf]
        %v1492 = vld [vmem:[#allocation11 + $0x70] sm:$0xf]
        %v1493 = vld [vmem:[#allocation11 + $0x74] sm:$0xf]
        %v1494 = vld [vmem:[#allocation11 + $0x78] sm:$0xf]
        %v1495 = vld [vmem:[#allocation11 + $0x7c] sm:$0xf]
        %v1496 = vld [vmem:[#allocation11 + $0x80] sm:$0xf]
        %v1497 = vld [vmem:[#allocation11 + $0x84] sm:$0xf]
        %v1498 = vld [vmem:[#allocation11 + $0x88] sm:$0xf]
        %v1499 = vld [vmem:[#allocation11 + $0x8c] sm:$0xf]
        %v1500 = vld [vmem:[#allocation11 + $0x90] sm:$0xf]
        %v1501 = vld [vmem:[#allocation11 + $0x94] sm:$0xf]
        %v1502 = vld [vmem:[#allocation11 + $0x98] sm:$0xf]
        %v1503 = vld [vmem:[#allocation11 + $0x9c] sm:$0xf]
        %v1504 = vld [vmem:[#allocation11 + $0xa0] sm:$0xf]
        %v1505 = vld [vmem:[#allocation11 + $0xa4] sm:$0xf]
        %v1506 = vld [vmem:[#allocation11 + $0xa8] sm:$0xf]
        %v1507 = vld [vmem:[#allocation11 + $0xac] sm:$0xf]
        %v1508 = vld [vmem:[#allocation11 + $0xb0] sm:$0xf]
        %v1509 = vld [vmem:[#allocation11 + $0xb4] sm:$0xf]
        %v1510 = vld [vmem:[#allocation11 + $0xb8] sm:$0xf]
        %v1511 = vld [vmem:[#allocation11 + $0xbc] sm:$0xf]
        %v1512 = vld [vmem:[#allocation11 + $0xc0] sm:$0xf]
        %v1513 = vld [vmem:[#allocation11 + $0xc4] sm:$0xf]
        %v1514 = vld [vmem:[#allocation11 + $0xc8] sm:$0xf]
        %v1515 = vld [vmem:[#allocation11 + $0xcc] sm:$0xf]
        %v1516 = vld [vmem:[#allocation11 + $0xd0] sm:$0xf]
        %v1517 = vld [vmem:[#allocation11 + $0xd4] sm:$0xf]
        %v1518 = vld [vmem:[#allocation11 + $0xd8] sm:$0xf]
        %v1519 = vld [vmem:[#allocation11 + $0xdc] sm:$0xf]
        %v1520 = vld [vmem:[#allocation11 + $0xe0] sm:$0xf]
        %v1521 = vld [vmem:[#allocation11 + $0xe4] sm:$0xf]
        %v1522 = vld [vmem:[#allocation11 + $0xe8] sm:$0xf]
        %v1523 = vld [vmem:[#allocation11 + $0xec] sm:$0xf]
        %v1524 = vld [vmem:[#allocation11 + $0xf0] sm:$0xf]
        %v1525 = vld [vmem:[#allocation11 + $0xf4] sm:$0xf]
        %v1526 = vld [vmem:[#allocation11 + $0xf8] sm:$0xf]
        %v1527 = vld [vmem:[#allocation11 + $0xfc] sm:$0xf]
        %v1592 = vunpack.c.l.b16 %v1464
        %v1593 = vunpack.c.l.b16 %v1465
        %v1594 = vunpack.c.l.b16 %v1466
        %v1595 = vunpack.c.l.b16 %v1467
        %v1596 = vunpack.c.l.b16 %v1468
        %v1597 = vunpack.c.l.b16 %v1469
        %v1598 = vunpack.c.l.b16 %v1470
        %v1599 = vunpack.c.l.b16 %v1471
        %v1600 = vunpack.c.l.b16 %v1472
        %v1601 = vunpack.c.l.b16 %v1473
        %v1602 = vunpack.c.l.b16 %v1474
        %v1603 = vunpack.c.l.b16 %v1475
        %v1604 = vunpack.c.l.b16 %v1476
        %v1605 = vunpack.c.l.b16 %v1477
        %v1606 = vunpack.c.l.b16 %v1478
        %v1607 = vunpack.c.l.b16 %v1479
        %v1608 = vunpack.c.l.b16 %v1480
        %v1609 = vunpack.c.l.b16 %v1481
        %v1610 = vunpack.c.l.b16 %v1482
        %v1611 = vunpack.c.l.b16 %v1483
        %v1612 = vunpack.c.l.b16 %v1484
        %v1613 = vunpack.c.l.b16 %v1485
        %v1614 = vunpack.c.l.b16 %v1486
        %v1615 = vunpack.c.l.b16 %v1487
        %v1616 = vunpack.c.l.b16 %v1488
        %v1617 = vunpack.c.l.b16 %v1489
        %v1618 = vunpack.c.l.b16 %v1490
        %v1619 = vunpack.c.l.b16 %v1491
        %v1620 = vunpack.c.l.b16 %v1492
        %v1621 = vunpack.c.l.b16 %v1493
        %v1622 = vunpack.c.l.b16 %v1494
        %v1623 = vunpack.c.l.b16 %v1495
        %v1624 = vunpack.c.l.b16 %v1496
        %v1625 = vunpack.c.l.b16 %v1497
        %v1626 = vunpack.c.l.b16 %v1498
        %v1627 = vunpack.c.l.b16 %v1499
        %v1628 = vunpack.c.l.b16 %v1500
        %v1629 = vunpack.c.l.b16 %v1501
        %v1630 = vunpack.c.l.b16 %v1502
        %v1631 = vunpack.c.l.b16 %v1503
        %v1632 = vunpack.c.l.b16 %v1504
        %v1633 = vunpack.c.l.b16 %v1505
        %v1634 = vunpack.c.l.b16 %v1506
        %v1635 = vunpack.c.l.b16 %v1507
        %v1636 = vunpack.c.l.b16 %v1508
        %v1637 = vunpack.c.l.b16 %v1509
        %v1638 = vunpack.c.l.b16 %v1510
        %v1639 = vunpack.c.l.b16 %v1511
        %v1640 = vunpack.c.l.b16 %v1512
        %v1641 = vunpack.c.l.b16 %v1513
        %v1642 = vunpack.c.l.b16 %v1514
        %v1643 = vunpack.c.l.b16 %v1515
        %v1644 = vunpack.c.l.b16 %v1516
        %v1645 = vunpack.c.l.b16 %v1517
        %v1646 = vunpack.c.l.b16 %v1518
        %v1647 = vunpack.c.l.b16 %v1519
        %v1648 = vunpack.c.l.b16 %v1520
        %v1649 = vunpack.c.l.b16 %v1521
        %v1650 = vunpack.c.l.b16 %v1522
        %v1651 = vunpack.c.l.b16 %v1523
        %v1652 = vunpack.c.l.b16 %v1524
        %v1653 = vunpack.c.l.b16 %v1525
        %v1654 = vunpack.c.l.b16 %v1526
        %v1655 = vunpack.c.l.b16 %v1527
        %v1656 = vpack.c.b16 %v1593, %v1592
        %v1657 = vpack.c.b16 %v1595, %v1594
        %v1658 = vpack.c.b16 %v1597, %v1596
        %v1659 = vpack.c.b16 %v1599, %v1598
        %v1660 = vpack.c.b16 %v1601, %v1600
        %v1661 = vpack.c.b16 %v1603, %v1602
        %v1662 = vpack.c.b16 %v1605, %v1604
        %v1663 = vpack.c.b16 %v1607, %v1606
        %v1664 = vpack.c.b16 %v1609, %v1608
        %v1665 = vpack.c.b16 %v1611, %v1610
        %v1666 = vpack.c.b16 %v1613, %v1612
        %v1667 = vpack.c.b16 %v1615, %v1614
        %v1668 = vpack.c.b16 %v1617, %v1616
        %v1669 = vpack.c.b16 %v1619, %v1618
        %v1670 = vpack.c.b16 %v1621, %v1620
        %v1671 = vpack.c.b16 %v1623, %v1622
        %v1672 = vpack.c.b16 %v1625, %v1624
        %v1673 = vpack.c.b16 %v1627, %v1626
        %v1674 = vpack.c.b16 %v1629, %v1628
        %v1675 = vpack.c.b16 %v1631, %v1630
        %v1676 = vpack.c.b16 %v1633, %v1632
        %v1677 = vpack.c.b16 %v1635, %v1634
        %v1678 = vpack.c.b16 %v1637, %v1636
        %v1679 = vpack.c.b16 %v1639, %v1638
        %v1680 = vpack.c.b16 %v1641, %v1640
        %v1681 = vpack.c.b16 %v1643, %v1642
        %v1682 = vpack.c.b16 %v1645, %v1644
        %v1683 = vpack.c.b16 %v1647, %v1646
        %v1684 = vpack.c.b16 %v1649, %v1648
        %v1685 = vpack.c.b16 %v1651, %v1650
        %v1686 = vpack.c.b16 %v1653, %v1652
        %v1687 = vpack.c.b16 %v1655, %v1654
        %1720 = vmatprep.subr.bf16.mxu0 0
        %1721 = vmatpush1.bf16.msra.mxu0 %v1656
        %1722 = vmatprep.subr.bf16.mxu0 0
        %1723 = vmatpush1.bf16.msra.mxu0 %v1657
        %1724 = vmatprep.subr.bf16.mxu0 0
        %1725 = vmatpush1.bf16.msra.mxu0 %v1658
        %1726 = vmatprep.subr.bf16.mxu0 0
        %1727 = vmatpush1.bf16.msra.mxu0 %v1659
        %1728 = vmatprep.subr.bf16.mxu0 0
        %1729 = vmatpush1.bf16.msra.mxu0 %v1660
        %1730 = vmatprep.subr.bf16.mxu0 0
        %1731 = vmatpush1.bf16.msra.mxu0 %v1661
        %1732 = vmatprep.subr.bf16.mxu0 0
        %1733 = vmatpush1.bf16.msra.mxu0 %v1662
        %1734 = vmatprep.subr.bf16.mxu0 0
        %1735 = vmatpush1.bf16.msra.mxu0 %v1663
        %1736 = vmatprep.subr.bf16.mxu0 0
        %1737 = vmatpush1.bf16.msra.mxu0 %v1664
        %1738 = vmatprep.subr.bf16.mxu0 0
        %1739 = vmatpush1.bf16.msra.mxu0 %v1665
        %1740 = vmatprep.subr.bf16.mxu0 0
        %1741 = vmatpush1.bf16.msra.mxu0 %v1666
        %1742 = vmatprep.subr.bf16.mxu0 0
        %1743 = vmatpush1.bf16.msra.mxu0 %v1667
        %1744 = vmatprep.subr.bf16.mxu0 0
        %1745 = vmatpush1.bf16.msra.mxu0 %v1668
        %1746 = vmatprep.subr.bf16.mxu0 0
        %1747 = vmatpush1.bf16.msra.mxu0 %v1669
        %1748 = vmatprep.subr.bf16.mxu0 0
        %1749 = vmatpush1.bf16.msra.mxu0 %v1670
        %1750 = vmatprep.subr.bf16.mxu0 0
        %1751 = vmatpush1.bf16.msra.mxu0 %v1671
        %1752 = vmatprep.mubr.bf16.mxu0 %v1461
        %1753 = vmatmul.mubr.bf16.gmra.mrb[0].mxu0 %v1460
        %v1754 = vpop.f32.mrb[0].mxu0
        %v1755 = vadd.f32 0.0, %v1754
        %v1756 = vpop.f32.mrb[0].mxu0
        %v1757 = vpop.f32.mrb[0].mxu0
        %v1758 = vadd.f32 0.0, %v1757
        %v1759 = vpop.f32.mrb[0].mxu0
        %1760 = vdwg.mxu0
        %1761 = vmatprep.subr.bf16.mxu0 0
        %1762 = vmatpush1.bf16.msra.mxu0 %v1672
        %1763 = vmatprep.subr.bf16.mxu0 0
        %1764 = vmatpush1.bf16.msra.mxu0 %v1673
        %1765 = vmatprep.subr.bf16.mxu0 0
        %1766 = vmatpush1.bf16.msra.mxu0 %v1674
        %1767 = vmatprep.subr.bf16.mxu0 0
        %1768 = vmatpush1.bf16.msra.mxu0 %v1675
        %1769 = vmatprep.subr.bf16.mxu0 0
        %1770 = vmatpush1.bf16.msra.mxu0 %v1676
        %1771 = vmatprep.subr.bf16.mxu0 0
        %1772 = vmatpush1.bf16.msra.mxu0 %v1677
        %1773 = vmatprep.subr.bf16.mxu0 0
        %1774 = vmatpush1.bf16.msra.mxu0 %v1678
        %1775 = vmatprep.subr.bf16.mxu0 0
        %1776 = vmatpush1.bf16.msra.mxu0 %v1679
        %1777 = vmatprep.subr.bf16.mxu0 0
        %1778 = vmatpush1.bf16.msra.mxu0 %v1680
        %1779 = vmatprep.subr.bf16.mxu0 0
        %1780 = vmatpush1.bf16.msra.mxu0 %v1681
        %1781 = vmatprep.subr.bf16.mxu0 0
        %1782 = vmatpush1.bf16.msra.mxu0 %v1682
        %1783 = vmatprep.subr.bf16.mxu0 0
        %1784 = vmatpush1.bf16.msra.mxu0 %v1683
        %1785 = vmatprep.subr.bf16.mxu0 0
        %1786 = vmatpush1.bf16.msra.mxu0 %v1684
        %1787 = vmatprep.subr.bf16.mxu0 0
        %1788 = vmatpush1.bf16.msra.mxu0 %v1685
        %1789 = vmatprep.subr.bf16.mxu0 0
        %1790 = vmatpush1.bf16.msra.mxu0 %v1686
        %1791 = vmatprep.subr.bf16.mxu0 0
        %1792 = vmatpush1.bf16.msra.mxu0 %v1687
        %1793 = vmatprep.mubr.bf16.mxu0 %v1463
        %1794 = vmatmul.mubr.bf16.gmra.mrb[0].mxu0 %v1462
        %v1795 = vpop.f32.mrb[0].mxu0
        %v1796 = vadd.f32 %v1755, %v1795
        %v1797 = vpop.f32.mrb[0].mxu0
        %v1798 = vpop.f32.mrb[0].mxu0
        %v1799 = vadd.f32 %v1758, %v1798
        %v1800 = vpop.f32.mrb[0].mxu0
        %1801 = vdwg.mxu0
        %v1802 = vadd.f32 %v1067, %v1796
        %v1803 = vadd.f32 %v1068, %v1799
        %v1804 = vld [vmem:[%s8] sm:$0x1]
        %v1806 = vlaneseq
        %v1807 = vshrl.u32 %v1806, 7
        %v1808 = vsub.s32 0, %v1807
        %v1809 = vrot.slane %v1804, %v1808
        %v1811 = vadd.f32 %v1802, %v1809
        %v1812 = vadd.f32 %v1803, %v1809
        %1813 = vst [vmem:[%s407] sm:$0xff] %v1811
        %1814 = vst [vmem:[%s407 + $0x8] sm:$0xff] %v1812
        %s1815 = sand.u32 %s230, 1
        %s1816 = scalar_lea.sflag [#allocation5], %s1815
        %s1817 = sand.u32 %s230, 1
        %s1818 = smul.addr %s1817, 16
        %s1819 = scalar_lea.vmem [#allocation12], %s1818
        // Predicated region
        $region77: #{tpu_custom_call.1} parent=55 // pred_check
          %p1820 = pneg %p240
        $region78: #{tpu_custom_call.1} parent=55 // pred_check_branch
          %1822 = sbr.rel (%p1820) target = $region80
        $region79: #{tpu_custom_call.1} parent=55 // pred_region
          %s1824 = ssub.s32 256, 256
          %1825 = vsyncadd %s1816, %s1824
          %s1826 = smul.addr %s28, 128
          %s1827 = scalar_lea.hbm %s9, %s1826
          %s1828 = sshll.u32 %s1819, 4
          %s1829 = int_to_ptr.vmem [resolvable:$true] %s1828
          %1834 = dma.vmem_to_hbm [thread:$0]  %s1829, 256, %s1827, %s1816, 128, 256, 8
        $region80: #{tpu_custom_call.1} parent=55 // pred_fallthru
          _
      $region56: #{tpu_custom_call.1} parent=5 // pred_fallthru
        _
      %p1835 = scmp.le.s32.totalorder 2, %s23
      // Predicated region
      $region81: #{tpu_custom_call.1} parent=5 // pred_check
        %p1836 = pneg %p1835
      $region82: #{tpu_custom_call.1} parent=5 // pred_check_branch
        %1838 = sbr.rel (%p1836) target = $region84
      $region83: #{tpu_custom_call.1} parent=5 // pred_region
        %s1839 = ssub.s32 %s23, 2
        // Predicated region
        $region85: #{tpu_custom_call.1} parent=83 // pred_check
          %p1840 = pneg %p246
        $region86: #{tpu_custom_call.1} parent=83 // pred_check_branch
          %1842 = sbr.rel (%p1840) target = $region88
        $region87: #{tpu_custom_call.1} parent=83 // pred_region
          %s1843 = sand.u32 %s231, 1
          %s1844 = scalar_lea.sflag [#allocation5], %s1843
          %s1845 = sand.u32 %s231, 1
          %s1846 = smul.addr %s1845, 16
          %s1847 = scalar_lea.vmem [#allocation12], %s1846
          %1848 = dma.done %s1844, 256
        $region88: #{tpu_custom_call.1} parent=83 // pred_fallthru
          _
      $region84: #{tpu_custom_call.1} parent=5 // pred_fallthru
        _
    $region6: #{tpu_custom_call.1} parent=1 // loop_footer
      %s27 = sadd.s32 1, %s23
    $region7: #{tpu_custom_call.1} parent=1 // loop_footer_branch
      %22 = sbr.rel target = $region3
    $region8: #{tpu_custom_call.1} parent=1 // loop_exit
      _
    %1849 = vsyncpa [#allocation4], 1
    %s1850 = scalar_lea.sflag [#allocation4], 1
    %1851 = vsyncpa %s1850, 1
    %1852 = vsyncpa [#allocation7], 1
    %1853 = vsyncpa [#allocation10], 1
    %1854 = vsyncpa [#allocation5], 1
    %s1855 = scalar_lea.sflag [#allocation5], 1
    %1856 = vsyncpa %s1855, 1

</llo_original>
